<compile_context>
chip_gen: v7x
topology: tpu7x:2x2x1
jax: 0.10.0
libtpu: 0.0.40
codegen_flags: <defaults>
</compile_context>

<pallas_src>
import jax
import jax.numpy as jnp
from jax import lax
from jax.experimental import pallas as pl
from jax.experimental.pallas import tpu as pltpu


# ---------------------------------------------------------------------------
# Prologue: 1x1-conv projections, computed once per batch element.
#   Q^T (B, N, C8p), K (B, C8p, N), V^T (B, N, C)  -- bf16 in HBM.
# ---------------------------------------------------------------------------
def _proj_kernel(wq_ref, bq_ref, wk_ref, bk_ref, wv_ref, bv_ref, x_ref,
                 qt_ref, k_ref, vt_ref):
    xb = x_ref[0].astype(jnp.bfloat16)                       # (C, TN)
    # Canonical bf16 matmuls, f32 accumulation on the MXU.
    q = jnp.dot(wq_ref[...], xb, preferred_element_type=jnp.float32) + bq_ref[...]
    k = jnp.dot(wk_ref[...], xb, preferred_element_type=jnp.float32) + bk_ref[...]
    v = jnp.dot(wv_ref[...], xb, preferred_element_type=jnp.float32) + bv_ref[...]
    # Store Q and V transposed so the attention loop only runs canonical
    # (M,K)x(K,N) matmuls; these are small, aligned f32 tile transposes done
    # once per spatial tile (not once per (q-tile, k-tile) step).
    qt_ref[0] = jnp.transpose(q).astype(qt_ref.dtype)        # (TN, C8p)
    k_ref[0] = k.astype(k_ref.dtype)                         # (C8p, TN)
    vt_ref[0] = jnp.transpose(v).astype(vt_ref.dtype)        # (TN, C)


# ---------------------------------------------------------------------------
# Flash-style attention over the precomputed projections.
# grid = (B, n_q, n_k); the key axis is "arbitrary" (sequential) and carries
# the online-softmax state in VMEM scratch.
# ---------------------------------------------------------------------------
def _attn_kernel(gamma_ref, x_ref, qt_ref, k_ref, vt_ref, o_ref,
                 m_scr, l_scr, acc_scr):
    ki = pl.program_id(2)

    @pl.when(ki == 0)
    def _init():
        m_scr[...] = jnp.full_like(m_scr, -jnp.inf)
        l_scr[...] = jnp.zeros_like(l_scr)
        acc_scr[...] = jnp.zeros_like(acc_scr)

    # energy[i, j] = sum_c q[c, i] * k[c, j]  -> (TQ, TK), f32 accumulation.
    energy = jnp.dot(qt_ref[0], k_ref[0], preferred_element_type=jnp.float32)

    m_prev = m_scr[...]
    m_new = jnp.maximum(m_prev, jnp.max(energy, axis=-1, keepdims=True))
    alpha = jnp.exp(m_prev - m_new)
    p = jnp.exp(energy - m_new)                               # unnormalized probs
    l_scr[...] = alpha * l_scr[...] + jnp.sum(p, axis=-1, keepdims=True)
    acc_scr[...] = alpha * acc_scr[...] + jnp.dot(
        p.astype(jnp.bfloat16), vt_ref[0], preferred_element_type=jnp.float32)
    m_scr[...] = m_new

    @pl.when(ki == pl.num_programs(2) - 1)
    def _finalize():
        inv_l = pl.reciprocal(l_scr[...], approx=True)        # EUP, not a VPU divide
        out_t = acc_scr[...] * inv_l                          # (TQ, C)
        out = jnp.transpose(out_t)                            # (C, TQ): small tile
        o_ref[0] = (gamma_ref[0] * out
                    + x_ref[0].astype(jnp.float32)).astype(o_ref.dtype)


def _pick_tile(n, preferred):
    for t in preferred:
        if n >= t and n % t == 0:
            return t
    return n   # fall back to the full (untiled) extent


def pam(x, wq, bq, wk, bk, wv, bv, gamma):
    """x: (B, C, H, W); wq/wk: (C//8, C); bq/bk: (C//8,); wv: (C, C); bv: (C,);
    gamma: scalar. Returns (B, C, H, W)."""
    B, C, H, W = x.shape
    N = H * W
    C8 = wq.shape[0]
    itemsize = x.dtype.itemsize
    bf16 = jnp.bfloat16

    # Zero-pad the C//8 projection dim to a multiple of 16: padded q/k rows are
    # exactly zero (zero weight rows, zero bias), so energy is unchanged, and
    # bf16 layouts / f32 transposes stay tile-aligned.
    C8p = max(16, ((C8 + 15) // 16) * 16)
    padr = C8p - C8
    wq_p = jnp.pad(wq, ((0, padr), (0, 0))).astype(bf16)
    wk_p = jnp.pad(wk, ((0, padr), (0, 0))).astype(bf16)
    bq_p = jnp.pad(bq, (0, padr)).reshape(C8p, 1).astype(jnp.float32)
    bk_p = jnp.pad(bk, (0, padr)).reshape(C8p, 1).astype(jnp.float32)
    wv_b = wv.astype(bf16)
    bv_2 = bv.reshape(C, 1).astype(jnp.float32)
    gamma_arr = jnp.asarray(gamma, jnp.float32).reshape((1,))

    # Only glue: flatten spatial dims so the lane axis is H*W.
    xf = x.reshape(B, C, N)

    TN = _pick_tile(N, (512, 256, 128))    # prologue spatial tile
    TQ = _pick_tile(N, (128,))             # query tile (keep >= 128 when possible)
    TK = _pick_tile(N, (512, 256, 128))    # key/value tile
    n_t, n_q, n_k = N // TN, N // TQ, N // TK

    # ---- projection prologue -----------------------------------------------
    proj_cost = pl.CostEstimate(
        flops=2 * B * N * C * (2 * C8p + C),
        transcendentals=0,
        bytes_accessed=B * N * (C * itemsize + (2 * C8p + C) * 2))
    qt_hbm, k_hbm, vt_hbm = pl.pallas_call(
        _proj_kernel,
        out_shape=(jax.ShapeDtypeStruct((B, N, C8p), bf16),   # Q^T
                   jax.ShapeDtypeStruct((B, C8p, N), bf16),   # K
                   jax.ShapeDtypeStruct((B, N, C), bf16)),    # V^T
        grid_spec=pltpu.PrefetchScalarGridSpec(
            num_scalar_prefetch=0,
            grid=(B, n_t),
            in_specs=[
                pl.BlockSpec((C8p, C), lambda b, t: (0, 0)),        # Wq (padded)
                pl.BlockSpec((C8p, 1), lambda b, t: (0, 0)),        # bq
                pl.BlockSpec((C8p, C), lambda b, t: (0, 0)),        # Wk (padded)
                pl.BlockSpec((C8p, 1), lambda b, t: (0, 0)),        # bk
                pl.BlockSpec((C, C), lambda b, t: (0, 0)),          # Wv
                pl.BlockSpec((C, 1), lambda b, t: (0, 0)),          # bv
                pl.BlockSpec((1, C, TN), lambda b, t: (b, 0, t)),   # x tile
            ],
            out_specs=(
                pl.BlockSpec((1, TN, C8p), lambda b, t: (b, t, 0)),  # Q^T
                pl.BlockSpec((1, C8p, TN), lambda b, t: (b, 0, t)),  # K
                pl.BlockSpec((1, TN, C), lambda b, t: (b, t, 0)),    # V^T
            ),
        ),
        compiler_params=pltpu.CompilerParams(
            dimension_semantics=("parallel", "parallel")),
        cost_estimate=proj_cost,
    )(wq_p, bq_p, wk_p, bk_p, wv_b, bv_2, xf)

    # ---- flash-style attention ----------------------------------------------
    # Explicit VMEM budget: per-step working set (double-buffered tiles +
    # scratch + temporaries) with headroom; stays a few MB regardless of N.
    per_step = (2 * (C * TQ * itemsize      # x query tile
                     + TQ * C8p * 2         # Q^T tile (bf16)
                     + C8p * TK * 2         # K tile (bf16)
                     + TK * C * 2           # V^T tile (bf16)
                     + C * TQ * itemsize)   # output tile
                + TQ * C * 4 + 2 * TQ * 4   # scratch acc / m / l
                + 4 * TQ * TK * 4)          # energy / p temporaries
    vmem_limit = int(min(48 * 1024 * 1024, max(16 * 1024 * 1024, 4 * per_step)))

    attn_cost = pl.CostEstimate(
        flops=2 * B * N * N * (C8p + C),
        transcendentals=B * N * N,
        bytes_accessed=B * (2 * N * C * itemsize             # x in, y out
                            + N * C8p * 2                    # Q^T read
                            + n_q * N * (C8p + C) * 2))      # K/V^T re-reads

    out = pl.pallas_call(
        _attn_kernel,
        out_shape=jax.ShapeDtypeStruct((B, C, N), x.dtype),
        grid_spec=pltpu.PrefetchScalarGridSpec(
            num_scalar_prefetch=0,
            grid=(B, n_q, n_k),
            in_specs=[
                pl.BlockSpec(memory_space=pltpu.MemorySpace.SMEM),          # gamma
                pl.BlockSpec((1, C, TQ), lambda b, qi, ki: (b, 0, qi)),     # x (residual)
                pl.BlockSpec((1, TQ, C8p), lambda b, qi, ki: (b, qi, 0)),   # Q^T tile
                pl.BlockSpec((1, C8p, TK), lambda b, qi, ki: (b, 0, ki)),   # K tile
                pl.BlockSpec((1, TK, C), lambda b, qi, ki: (b, ki, 0)),     # V^T tile
            ],
            out_specs=pl.BlockSpec((1, C, TQ), lambda b, qi, ki: (b, 0, qi)),
            scratch_shapes=[
                pltpu.VMEM((TQ, 1), jnp.float32),   # running max m
                pltpu.VMEM((TQ, 1), jnp.float32),   # running sum l
                pltpu.VMEM((TQ, C), jnp.float32),   # output accumulator (TQ, C)
            ],
        ),
        compiler_params=pltpu.CompilerParams(
            dimension_semantics=("parallel", "parallel", "arbitrary"),
            vmem_limit_bytes=vmem_limit),
        cost_estimate=attn_cost,
    )(gamma_arr, xf, qt_hbm, k_hbm, vt_hbm)

    return out.reshape(B, C, H, W)


def _reference(x, wq, bq, wk, bk, wv, bv, gamma):
    B, C, H, W = x.shape
    N = H * W
    hp = lax.Precision.HIGHEST
    xf = x.reshape(B, C, N).astype(jnp.float32)
    q = jnp.einsum("oc,bcn->bon", wq, xf, precision=hp) + bq[None, :, None]
    k = jnp.einsum("oc,bcn->bon", wk, xf, precision=hp) + bk[None, :, None]
    v = jnp.einsum("oc,bcn->bon", wv, xf, precision=hp) + bv[None, :, None]
    energy = jnp.einsum("bci,bcj->bij", q, k, precision=hp)          # (B, N, N)
    attn = jax.nn.softmax(energy, axis=-1)
    out = jnp.einsum("bcj,bij->bci", v, attn, precision=hp)          # (B, C, N)
    y = gamma * out + xf
    return y.reshape(B, C, H, W).astype(x.dtype)


if __name__ == "__main__":
    key = jax.random.PRNGKey(0)
    ks = jax.random.split(key, 8)

    # in_dim must be >= 8 so that in_dim // 8 >= 1 (as the PyTorch module requires).
    # H=W=32 so that both the query axis (n_q=8) and key axis (n_k=2) are tiled,
    # exercising the online-softmax recurrence.
    B, C, H, W = 2, 32, 32, 32
    C8 = C // 8

    x = jax.random.normal(ks[0], (B, C, H, W), dtype=jnp.float32)

    def conv_init(kw, kb, out_c, in_c):
        # nn.Conv2d(in_c, out_c, 1) default init: U(-1/sqrt(fan_in), 1/sqrt(fan_in)).
        bound = 1.0 / (in_c ** 0.5)
        w = jax.random.uniform(kw, (out_c, in_c), jnp.float32, -bound, bound)
        b = jax.random.uniform(kb, (out_c,), jnp.float32, -bound, bound)
        return w, b

    wq, bq = conv_init(ks[1], ks[2], C8, C)
    wk, bk = conv_init(ks[3], ks[4], C8, C)
    wv, bv = conv_init(ks[5], ks[6], C, C)
    # nn.Parameter init is 0 (output == x); use a nonzero gamma so the test is meaningful.
    gamma = jnp.float32(0.7)

    y = pam(x, wq, bq, wk, bk, wv, bv, gamma)
    y = jax.block_until_ready(y)

    y_ref = _reference(x, wq, bq, wk, bk, wv, bv, gamma)
    assert y.shape == (B, C, H, W)
    # bf16 MXU operands (f32 accumulation / softmax stats) -> looser tolerance
    # than the previous all-f32 kernel.
    assert jnp.allclose(y, y_ref, atol=2e-2, rtol=2e-2), "mismatch vs reference"

    print("KERNEL_OK")
</pallas_src>

<mosaic_0001>
module attributes {stable_mosaic.version = 11 : i64} {
  func.func @_proj_kernel(%arg0: i32, %arg1: i32, %arg2: memref<16x32xbf16, #tpu.memory_space<vmem>>, %arg3: memref<16x1xf32, #tpu.memory_space<vmem>>, %arg4: memref<16x32xbf16, #tpu.memory_space<vmem>>, %arg5: memref<16x1xf32, #tpu.memory_space<vmem>>, %arg6: memref<32x32xbf16, #tpu.memory_space<vmem>>, %arg7: memref<32x1xf32, #tpu.memory_space<vmem>>, %arg8: memref<1x32x512xf32, #tpu.memory_space<vmem>>, %arg9: memref<1x512x16xbf16, #tpu.memory_space<vmem>>, %arg10: memref<1x16x512xbf16, #tpu.memory_space<vmem>>, %arg11: memref<1x512x32xbf16, #tpu.memory_space<vmem>>) attributes {dimension_semantics = [#tpu.dimension_semantics<parallel>, #tpu.dimension_semantics<parallel>], iteration_bounds = array<i64: 2, 2>, scalar_prefetch = 0 : i64, scratch_operands = 0 : i64, tpu.core_type = #tpu.core_type<tc>, window_params = [{pipeline_mode = #tpu.pipeline_mode<synchronous>, transform_indices = @transform_0, window_bounds = array<i64: 16, 32>}, {pipeline_mode = #tpu.pipeline_mode<synchronous>, transform_indices = @transform_1, window_bounds = array<i64: 16, 1>}, {pipeline_mode = #tpu.pipeline_mode<synchronous>, transform_indices = @transform_2, window_bounds = array<i64: 16, 32>}, {pipeline_mode = #tpu.pipeline_mode<synchronous>, transform_indices = @transform_3, window_bounds = array<i64: 16, 1>}, {pipeline_mode = #tpu.pipeline_mode<synchronous>, transform_indices = @transform_4, window_bounds = array<i64: 32, 32>}, {pipeline_mode = #tpu.pipeline_mode<synchronous>, transform_indices = @transform_5, window_bounds = array<i64: 32, 1>}, {transform_indices = @transform_6, window_bounds = array<i64: 1, 32, 512>}, {transform_indices = @transform_7, window_bounds = array<i64: 1, 512, 16>}, {transform_indices = @transform_8, window_bounds = array<i64: 1, 16, 512>}, {transform_indices = @transform_9, window_bounds = array<i64: 1, 512, 32>}]} {
    %c0 = arith.constant 0 : index
    %c0_0 = arith.constant 0 : index
    %c0_1 = arith.constant 0 : index
    %0 = vector.load %arg8[%c0, %c0_0, %c0_1] : memref<1x32x512xf32, #tpu.memory_space<vmem>>, vector<1x32x512xf32>
    %1 = vector.shape_cast %0 : vector<1x32x512xf32> to vector<32x512xf32>
    %2 = arith.truncf %1 : vector<32x512xf32> to vector<32x512xbf16>
    %c0_2 = arith.constant 0 : index
    %c0_3 = arith.constant 0 : index
    %3 = vector.load %arg2[%c0_2, %c0_3] : memref<16x32xbf16, #tpu.memory_space<vmem>>, vector<16x32xbf16>
    %cst = arith.constant dense<0.000000e+00> : vector<16x512xf32>
    %4 = tpu.matmul %3, %2, %cst {dimension_numbers = #tpu.dot_dimension_numbers<[1], [0], [0], [1], [0, 0, 1, 1], [], []>} : vector<16x32xbf16>, vector<32x512xbf16>, vector<16x512xf32> -> vector<16x512xf32>
    %c0_4 = arith.constant 0 : index
    %c0_5 = arith.constant 0 : index
    %5 = vector.load %arg3[%c0_4, %c0_5] : memref<16x1xf32, #tpu.memory_space<vmem>>, vector<16x1xf32>
    %6 = vector.broadcast %5 : vector<16x1xf32> to vector<16x512xf32>
    %7 = arith.addf %4, %6 : vector<16x512xf32>
    %c0_6 = arith.constant 0 : index
    %c0_7 = arith.constant 0 : index
    %8 = vector.load %arg4[%c0_6, %c0_7] : memref<16x32xbf16, #tpu.memory_space<vmem>>, vector<16x32xbf16>
    %cst_8 = arith.constant dense<0.000000e+00> : vector<16x512xf32>
    %9 = tpu.matmul %8, %2, %cst_8 {dimension_numbers = #tpu.dot_dimension_numbers<[1], [0], [0], [1], [0, 0, 1, 1], [], []>} : vector<16x32xbf16>, vector<32x512xbf16>, vector<16x512xf32> -> vector<16x512xf32>
    %c0_9 = arith.constant 0 : index
    %c0_10 = arith.constant 0 : index
    %10 = vector.load %arg5[%c0_9, %c0_10] : memref<16x1xf32, #tpu.memory_space<vmem>>, vector<16x1xf32>
    %11 = vector.broadcast %10 : vector<16x1xf32> to vector<16x512xf32>
    %12 = arith.addf %9, %11 : vector<16x512xf32>
    %c0_11 = arith.constant 0 : index
    %c0_12 = arith.constant 0 : index
    %13 = vector.load %arg6[%c0_11, %c0_12] : memref<32x32xbf16, #tpu.memory_space<vmem>>, vector<32x32xbf16>
    %cst_13 = arith.constant dense<0.000000e+00> : vector<32x512xf32>
    %14 = tpu.matmul %13, %2, %cst_13 {dimension_numbers = #tpu.dot_dimension_numbers<[1], [0], [0], [1], [0, 0, 1, 1], [], []>} : vector<32x32xbf16>, vector<32x512xbf16>, vector<32x512xf32> -> vector<32x512xf32>
    %c0_14 = arith.constant 0 : index
    %c0_15 = arith.constant 0 : index
    %15 = vector.load %arg7[%c0_14, %c0_15] : memref<32x1xf32, #tpu.memory_space<vmem>>, vector<32x1xf32>
    %16 = vector.broadcast %15 : vector<32x1xf32> to vector<32x512xf32>
    %17 = arith.addf %14, %16 : vector<32x512xf32>
    %18 = tpu.transpose %7, [1, 0] : vector<16x512xf32> -> vector<512x16xf32>
    %19 = arith.truncf %18 : vector<512x16xf32> to vector<512x16xbf16>
    %c0_16 = arith.constant 0 : index
    %c0_17 = arith.constant 0 : index
    %c0_18 = arith.constant 0 : index
    %20 = vector.load %arg9[%c0_16, %c0_17, %c0_18] : memref<1x512x16xbf16, #tpu.memory_space<vmem>>, vector<1x512x16xbf16>
    %21 = vector.shape_cast %20 : vector<1x512x16xbf16> to vector<512x16xbf16>
    %22 = vector.shape_cast %19 : vector<512x16xbf16> to vector<1x512x16xbf16>
    tpu.vector_store %arg9[%c0_16, %c0_17, %c0_18], %22 {strides = array<i32>} : memref<1x512x16xbf16, #tpu.memory_space<vmem>>, vector<1x512x16xbf16>,
    %23 = arith.truncf %12 : vector<16x512xf32> to vector<16x512xbf16>
    %c0_19 = arith.constant 0 : index
    %c0_20 = arith.constant 0 : index
    %c0_21 = arith.constant 0 : index
    %24 = vector.load %arg10[%c0_19, %c0_20, %c0_21] : memref<1x16x512xbf16, #tpu.memory_space<vmem>>, vector<1x16x512xbf16>
    %25 = vector.shape_cast %24 : vector<1x16x512xbf16> to vector<16x512xbf16>
    %26 = vector.shape_cast %23 : vector<16x512xbf16> to vector<1x16x512xbf16>
    tpu.vector_store %arg10[%c0_19, %c0_20, %c0_21], %26 {strides = array<i32>} : memref<1x16x512xbf16, #tpu.memory_space<vmem>>, vector<1x16x512xbf16>,
    %27 = tpu.transpose %17, [1, 0] : vector<32x512xf32> -> vector<512x32xf32>
    %28 = arith.truncf %27 : vector<512x32xf32> to vector<512x32xbf16>
    %c0_22 = arith.constant 0 : index
    %c0_23 = arith.constant 0 : index
    %c0_24 = arith.constant 0 : index
    %29 = vector.load %arg11[%c0_22, %c0_23, %c0_24] : memref<1x512x32xbf16, #tpu.memory_space<vmem>>, vector<1x512x32xbf16>
    %30 = vector.shape_cast %29 : vector<1x512x32xbf16> to vector<512x32xbf16>
    %31 = vector.shape_cast %28 : vector<512x32xbf16> to vector<1x512x32xbf16>
    tpu.vector_store %arg11[%c0_22, %c0_23, %c0_24], %31 {strides = array<i32>} : memref<1x512x32xbf16, #tpu.memory_space<vmem>>, vector<1x512x32xbf16>,
    return
  }
  func.func @transform_0(%arg0: i32, %arg1: i32) -> (i32, i32) {
    %c0_i32 = arith.constant 0 : i32
    %c0_i32_0 = arith.constant 0 : i32
    %c0_i32_1 = arith.constant 0 : i32
    return %c0_i32, %c0_i32_0 : i32, i32
  }
  func.func @transform_1(%arg0: i32, %arg1: i32) -> (i32, i32) {
    %c0_i32 = arith.constant 0 : i32
    %c0_i32_0 = arith.constant 0 : i32
    %c0_i32_1 = arith.constant 0 : i32
    return %c0_i32, %c0_i32_0 : i32, i32
  }
  func.func @transform_2(%arg0: i32, %arg1: i32) -> (i32, i32) {
    %c0_i32 = arith.constant 0 : i32
    %c0_i32_0 = arith.constant 0 : i32
    %c0_i32_1 = arith.constant 0 : i32
    return %c0_i32, %c0_i32_0 : i32, i32
  }
  func.func @transform_3(%arg0: i32, %arg1: i32) -> (i32, i32) {
    %c0_i32 = arith.constant 0 : i32
    %c0_i32_0 = arith.constant 0 : i32
    %c0_i32_1 = arith.constant 0 : i32
    return %c0_i32, %c0_i32_0 : i32, i32
  }
  func.func @transform_4(%arg0: i32, %arg1: i32) -> (i32, i32) {
    %c0_i32 = arith.constant 0 : i32
    %c0_i32_0 = arith.constant 0 : i32
    %c0_i32_1 = arith.constant 0 : i32
    return %c0_i32, %c0_i32_0 : i32, i32
  }
  func.func @transform_5(%arg0: i32, %arg1: i32) -> (i32, i32) {
    %c0_i32 = arith.constant 0 : i32
    %c0_i32_0 = arith.constant 0 : i32
    %c0_i32_1 = arith.constant 0 : i32
    return %c0_i32, %c0_i32_0 : i32, i32
  }
  func.func @transform_6(%arg0: i32, %arg1: i32) -> (i32, i32, i32) {
    %c0_i32 = arith.constant 0 : i32
    %c0_i32_0 = arith.constant 0 : i32
    return %arg0, %c0_i32, %arg1 : i32, i32, i32
  }
  func.func @transform_7(%arg0: i32, %arg1: i32) -> (i32, i32, i32) {
    %c0_i32 = arith.constant 0 : i32
    %c0_i32_0 = arith.constant 0 : i32
    return %arg0, %arg1, %c0_i32 : i32, i32, i32
  }
  func.func @transform_8(%arg0: i32, %arg1: i32) -> (i32, i32, i32) {
    %c0_i32 = arith.constant 0 : i32
    %c0_i32_0 = arith.constant 0 : i32
    return %arg0, %c0_i32, %arg1 : i32, i32, i32
  }
  func.func @transform_9(%arg0: i32, %arg1: i32) -> (i32, i32, i32) {
    %c0_i32 = arith.constant 0 : i32
    %c0_i32_0 = arith.constant 0 : i32
    return %arg0, %arg1, %c0_i32 : i32, i32, i32
  }
}

</mosaic_0001>

<llo_original>
// kernel: tpu_custom_call.1
$region0: #{tpu_custom_call.1}
  #allocation0 [shape = 'u32[]', space=smem, size = 0x4, offset = 0x4, fixed_abs, tag = 'smem constant byte address 0x4 - core index']
  #allocation1 [shape = 'u32[144,128]{1,0:T(1,128)}', space=vmem, size = 0x12000, scoped, tag = 'internal scratch']
  %s0 = inlined_call_operand.vmem [shape: bf16[16,32], index: 0, kind: input, shape index: {}]
  %s1 = inlined_call_operand.vmem [shape: f32[16,1], index: 1, kind: input, shape index: {}]
  %s2 = inlined_call_operand.vmem [shape: bf16[16,32], index: 2, kind: input, shape index: {}]
  %s3 = inlined_call_operand.vmem [shape: f32[16,1], index: 3, kind: input, shape index: {}]
  %s4 = inlined_call_operand.vmem [shape: bf16[32,32], index: 4, kind: input, shape index: {}]
  %s5 = inlined_call_operand.vmem [shape: f32[32,1], index: 5, kind: input, shape index: {}]
  %s6 = inlined_call_operand.hbm [shape: f32[2,32,1024], index: 6, kind: input, shape index: {}]
  %s7 = inlined_call_operand.vmem [shape: bf16[2,1024,16], index: 7, kind: output, shape index: {0}]
  %s8 = inlined_call_operand.hbm [shape: bf16[2,16,1024], index: 8, kind: output, shape index: {1}]
  %s9 = inlined_call_operand.vmem [shape: bf16[2,1024,32], index: 9, kind: output, shape index: {2}]
  %10 = xla_tuple %s7, %s8, %s9
  %s11 = sld [smem:[#allocation0]]
  $region81: #{tpu_custom_call.1} parent=0
    _
  %s13 = ssub.s32 1, %s11
  %s14 = scalar_select 0, %s13, %s11
  $region1: #{tpu_custom_call.1} parent=0
    #allocation2 [shape = 'u8[131072]{0}', space=vmem, size = 0x20000, scoped, tag = 'input window, operand 6']
    #allocation3 [shape = 's32[2]{0}', space=sflag, size = 0x8, scoped, tag = 'scoped memory for tpu_custom_call.1']
    #allocation4 [shape = 's32[2]{0}', space=sflag, size = 0x8, scoped, tag = 'scoped memory for tpu_custom_call.1']
    #allocation5 [shape = 'u8[32768]{0}', space=vmem, size = 0x8000, scoped, tag = 'output window, operand 1']
    %15 = vsyncpa [#allocation3], 0
    %s16 = scalar_lea.sflag [#allocation3], 1
    %17 = vsyncpa %s16, 0
    %18 = vsyncpa [#allocation4], 0
    %s19 = scalar_lea.sflag [#allocation4], 1
    %20 = vsyncpa %s19, 0
    loop: start=0, step=1, limit=6
    $region2: #{tpu_custom_call.1} parent=1 // loop_pre_header
      _
    $region3: #{tpu_custom_call.1} parent=1 // loop_header
      %s22 = sphi 0, %s26
      %p23 = scmp.ge.s32.totalorder %s22, 6
      %s29 = sphi 0, %s41
      %s30 = sphi 0, %s37
      %s31 = sphi 0, %s29
      %s32 = sphi 0, %s30
      %s33 = sphi 0, %s31
      %s34 = sphi 0, %s32
      %s42 = sphi 0, %s42
      %s44 = sphi 0, %s42
      %s45 = sphi 0, %s44
      %s59 = sphi 0, %s45
      %s63 = sphi 0, %s63
      %s65 = sphi 0, %s63
      %s66 = sphi 0, %s65
      %s80 = sphi 0, %s66
      %s84 = sphi 0, %s84
      %s86 = sphi 0, %s84
      %s87 = sphi 0, %s86
      %s101 = sphi 0, %s87
      %s105 = sphi 0, %s105
      %s107 = sphi 0, %s105
      %s108 = sphi 0, %s107
      %s122 = sphi 0, %s108
      %s126 = sphi 0, %s126
      %s128 = sphi 0, %s126
      %s129 = sphi 0, %s128
      %s143 = sphi 0, %s129
      %s147 = sphi 0, %s147
      %s149 = sphi 0, %s147
      %s150 = sphi 0, %s149
      %s164 = sphi 0, %s150
      %s172 = sphi 0, %s174
      %s175 = sphi 0, %s172
      %s176 = sphi 0, %s175
      %s192 = sphi 0, %s176
      %s200 = sphi 0, %s202
      %s203 = sphi 0, %s200
      %s204 = sphi 0, %s203
      %s220 = sphi 0, %s204
      %s228 = sphi 0, %s230
      %s231 = sphi 0, %s228
      %s232 = sphi 0, %s231
      %s248 = sphi 0, %s232
      %s256 = sphi 0, %s258
      %s259 = sphi 0, %s256
      %s260 = sphi 0, %s259
      %s276 = sphi 0, %s260
    $region4: #{tpu_custom_call.1} parent=1 // loop_header_branch
      %25 = sbr.rel (%p23) target = $region8
    $region5: #{tpu_custom_call.1} parent=1 // loop_body
      %s27 = ssub.s32 %s22, 1
      %s28 = ssub.s32 %s22, 2
      %s35 = sadd.s32 1, %s30
      %p36 = scmp.ge.s32.totalorder %s35, 2
      %s37 = scalar_select %p36, 0, %s35
      %s38 = sadd.s32 1, %s29
      %s39 = scalar_select %p36, %s38, %s29
      %p40 = scmp.ge.s32.totalorder %s39, 2
      %s41 = scalar_select %p40, 0, %s39
      %s43 = sadd.s32 %s42, 1
      %p46 = scmp.eq.s32.totalorder %s22, 3
      %p47 = scmp.ne.s32.totalorder %s42, %s44
      %p48 = scmp.eq.s32.totalorder %s22, 0
      %p49 = por %p47, %p48
      %p50 = scmp.ne.s32.totalorder %s42, %s44
      %p51 = scmp.eq.s32.totalorder %s27, 3
      %p52 = por %p50, %p51
      %p53 = scmp.ne.s32.totalorder %s44, %s45
      %p54 = scmp.eq.s32.totalorder %s27, 0
      %p55 = por %p53, %p54
      %p56 = scmp.ne.s32.totalorder %s44, %s45
      %p57 = scmp.eq.s32.totalorder %s28, 3
      %p58 = por %p56, %p57
      %p60 = scmp.ne.s32.totalorder %s45, %s59
      %p61 = scmp.eq.s32.totalorder %s28, 0
      %p62 = por %p60, %p61
      %s64 = sadd.s32 %s63, 1
      %p67 = scmp.eq.s32.totalorder %s22, 3
      %p68 = scmp.ne.s32.totalorder %s63, %s65
      %p69 = scmp.eq.s32.totalorder %s22, 0
      %p70 = por %p68, %p69
      %p71 = scmp.ne.s32.totalorder %s63, %s65
      %p72 = scmp.eq.s32.totalorder %s27, 3
      %p73 = por %p71, %p72
      %p74 = scmp.ne.s32.totalorder %s65, %s66
      %p75 = scmp.eq.s32.totalorder %s27, 0
      %p76 = por %p74, %p75
      %p77 = scmp.ne.s32.totalorder %s65, %s66
      %p78 = scmp.eq.s32.totalorder %s28, 3
      %p79 = por %p77, %p78
      %p81 = scmp.ne.s32.totalorder %s66, %s80
      %p82 = scmp.eq.s32.totalorder %s28, 0
      %p83 = por %p81, %p82
      %s85 = sadd.s32 %s84, 1
      %p88 = scmp.eq.s32.totalorder %s22, 3
      %p89 = scmp.ne.s32.totalorder %s84, %s86
      %p90 = scmp.eq.s32.totalorder %s22, 0
      %p91 = por %p89, %p90
      %p92 = scmp.ne.s32.totalorder %s84, %s86
      %p93 = scmp.eq.s32.totalorder %s27, 3
      %p94 = por %p92, %p93
      %p95 = scmp.ne.s32.totalorder %s86, %s87
      %p96 = scmp.eq.s32.totalorder %s27, 0
      %p97 = por %p95, %p96
      %p98 = scmp.ne.s32.totalorder %s86, %s87
      %p99 = scmp.eq.s32.totalorder %s28, 3
      %p100 = por %p98, %p99
      %p102 = scmp.ne.s32.totalorder %s87, %s101
      %p103 = scmp.eq.s32.totalorder %s28, 0
      %p104 = por %p102, %p103
      %s106 = sadd.s32 %s105, 1
      %p109 = scmp.eq.s32.totalorder %s22, 3
      %p110 = scmp.ne.s32.totalorder %s105, %s107
      %p111 = scmp.eq.s32.totalorder %s22, 0
      %p112 = por %p110, %p111
      %p113 = scmp.ne.s32.totalorder %s105, %s107
      %p114 = scmp.eq.s32.totalorder %s27, 3
      %p115 = por %p113, %p114
      %p116 = scmp.ne.s32.totalorder %s107, %s108
      %p117 = scmp.eq.s32.totalorder %s27, 0
      %p118 = por %p116, %p117
      %p119 = scmp.ne.s32.totalorder %s107, %s108
      %p120 = scmp.eq.s32.totalorder %s28, 3
      %p121 = por %p119, %p120
      %p123 = scmp.ne.s32.totalorder %s108, %s122
      %p124 = scmp.eq.s32.totalorder %s28, 0
      %p125 = por %p123, %p124
      %s127 = sadd.s32 %s126, 1
      %p130 = scmp.eq.s32.totalorder %s22, 3
      %p131 = scmp.ne.s32.totalorder %s126, %s128
      %p132 = scmp.eq.s32.totalorder %s22, 0
      %p133 = por %p131, %p132
      %p134 = scmp.ne.s32.totalorder %s126, %s128
      %p135 = scmp.eq.s32.totalorder %s27, 3
      %p136 = por %p134, %p135
      %p137 = scmp.ne.s32.totalorder %s128, %s129
      %p138 = scmp.eq.s32.totalorder %s27, 0
      %p139 = por %p137, %p138
      %p140 = scmp.ne.s32.totalorder %s128, %s129
      %p141 = scmp.eq.s32.totalorder %s28, 3
      %p142 = por %p140, %p141
      %p144 = scmp.ne.s32.totalorder %s129, %s143
      %p145 = scmp.eq.s32.totalorder %s28, 0
      %p146 = por %p144, %p145
      %s148 = sadd.s32 %s147, 1
      %p151 = scmp.eq.s32.totalorder %s22, 3
      %p152 = scmp.ne.s32.totalorder %s147, %s149
      %p153 = scmp.eq.s32.totalorder %s22, 0
      %p154 = por %p152, %p153
      %p155 = scmp.ne.s32.totalorder %s147, %s149
      %p156 = scmp.eq.s32.totalorder %s27, 3
      %p157 = por %p155, %p156
      %p158 = scmp.ne.s32.totalorder %s149, %s150
      %p159 = scmp.eq.s32.totalorder %s27, 0
      %p160 = por %p158, %p159
      %p161 = scmp.ne.s32.totalorder %s149, %s150
      %p162 = scmp.eq.s32.totalorder %s28, 3
      %p163 = por %p161, %p162
      %p165 = scmp.ne.s32.totalorder %s150, %s164
      %p166 = scmp.eq.s32.totalorder %s28, 0
      %p167 = por %p165, %p166
      %s168 = ssub.s32 %s29, %s41
      %s169 = ssub.s32 %s30, %s37
      %s170 = sor.u32 %s168, %s169
      %p171 = scmp.eq.s32.totalorder %s170, 0
      %s173 = sadd.s32 %s172, 1
      %s174 = scalar_select %p171, %s172, %s173
      %p177 = pneg %p171
      %p178 = scmp.eq.s32.totalorder %s22, 3
      %p179 = por %p177, %p178
      %p180 = scmp.ne.s32.totalorder %s172, %s175
      %p181 = scmp.eq.s32.totalorder %s22, 0
      %p182 = por %p180, %p181
      %p183 = scmp.ne.s32.totalorder %s172, %s175
      %p184 = scmp.eq.s32.totalorder %s27, 3
      %p185 = por %p183, %p184
      %p186 = scmp.ne.s32.totalorder %s175, %s176
      %p187 = scmp.eq.s32.totalorder %s27, 0
      %p188 = por %p186, %p187
      %p189 = scmp.ne.s32.totalorder %s175, %s176
      %p190 = scmp.eq.s32.totalorder %s28, 3
      %p191 = por %p189, %p190
      %p193 = scmp.ne.s32.totalorder %s176, %s192
      %p194 = scmp.eq.s32.totalorder %s28, 0
      %p195 = por %p193, %p194
      %s196 = ssub.s32 %s29, %s41
      %s197 = ssub.s32 %s30, %s37
      %s198 = sor.u32 %s196, %s197
      %p199 = scmp.eq.s32.totalorder %s198, 0
      %s201 = sadd.s32 %s200, 1
      %s202 = scalar_select %p199, %s200, %s201
      %p205 = pneg %p199
      %p206 = scmp.eq.s32.totalorder %s22, 3
      %p207 = por %p205, %p206
      %p208 = scmp.ne.s32.totalorder %s200, %s203
      %p209 = scmp.eq.s32.totalorder %s22, 0
      %p210 = por %p208, %p209
      %p211 = scmp.ne.s32.totalorder %s200, %s203
      %p212 = scmp.eq.s32.totalorder %s27, 3
      %p213 = por %p211, %p212
      %p214 = scmp.ne.s32.totalorder %s203, %s204
      %p215 = scmp.eq.s32.totalorder %s27, 0
      %p216 = por %p214, %p215
      %p217 = scmp.ne.s32.totalorder %s203, %s204
      %p218 = scmp.eq.s32.totalorder %s28, 3
      %p219 = por %p217, %p218
      %p221 = scmp.ne.s32.totalorder %s204, %s220
      %p222 = scmp.eq.s32.totalorder %s28, 0
      %p223 = por %p221, %p222
      %s224 = ssub.s32 %s29, %s41
      %s225 = ssub.s32 %s30, %s37
      %s226 = sor.u32 %s224, %s225
      %p227 = scmp.eq.s32.totalorder %s226, 0
      %s229 = sadd.s32 %s228, 1
      %s230 = scalar_select %p227, %s228, %s229
      %p233 = pneg %p227
      %p234 = scmp.eq.s32.totalorder %s22, 3
      %p235 = por %p233, %p234
      %p236 = scmp.ne.s32.totalorder %s228, %s231
      %p237 = scmp.eq.s32.totalorder %s22, 0
      %p238 = por %p236, %p237
      %p239 = scmp.ne.s32.totalorder %s228, %s231
      %p240 = scmp.eq.s32.totalorder %s27, 3
      %p241 = por %p239, %p240
      %p242 = scmp.ne.s32.totalorder %s231, %s232
      %p243 = scmp.eq.s32.totalorder %s27, 0
      %p244 = por %p242, %p243
      %p245 = scmp.ne.s32.totalorder %s231, %s232
      %p246 = scmp.eq.s32.totalorder %s28, 3
      %p247 = por %p245, %p246
      %p249 = scmp.ne.s32.totalorder %s232, %s248
      %p250 = scmp.eq.s32.totalorder %s28, 0
      %p251 = por %p249, %p250
      %s252 = ssub.s32 %s29, %s41
      %s253 = ssub.s32 %s30, %s37
      %s254 = sor.u32 %s252, %s253
      %p255 = scmp.eq.s32.totalorder %s254, 0
      %s257 = sadd.s32 %s256, 1
      %s258 = scalar_select %p255, %s256, %s257
      %p261 = pneg %p255
      %p262 = scmp.eq.s32.totalorder %s22, 3
      %p263 = por %p261, %p262
      %p264 = scmp.ne.s32.totalorder %s256, %s259
      %p265 = scmp.eq.s32.totalorder %s22, 0
      %p266 = por %p264, %p265
      %p267 = scmp.ne.s32.totalorder %s256, %s259
      %p268 = scmp.eq.s32.totalorder %s27, 3
      %p269 = por %p267, %p268
      %p270 = scmp.ne.s32.totalorder %s259, %s260
      %p271 = scmp.eq.s32.totalorder %s27, 0
      %p272 = por %p270, %p271
      %p273 = scmp.ne.s32.totalorder %s259, %s260
      %p274 = scmp.eq.s32.totalorder %s28, 3
      %p275 = por %p273, %p274
      %p277 = scmp.ne.s32.totalorder %s260, %s276
      %p278 = scmp.eq.s32.totalorder %s28, 0
      %p279 = por %p277, %p278
      %p280 = scmp.le.s32.totalorder 1, %s22
      %p281 = scmp.lt.s32.totalorder %s22, 5
      %p282 = pnand %p280, %p281
      %p283 = pneg %p282
      // Predicated region
      $region9: #{tpu_custom_call.1} parent=5 // pred_check
        _
      $region10: #{tpu_custom_call.1} parent=5 // pred_check_branch
        %285 = sbr.rel (%p282) target = $region12
      $region11: #{tpu_custom_call.1} parent=5 // pred_region
        %s286 = ssub.s32 %s22, 1
        // Predicated region
        $region13: #{tpu_custom_call.1} parent=11 // pred_check
          %p287 = pneg %p55
        $region14: #{tpu_custom_call.1} parent=11 // pred_check_branch
          %289 = sbr.rel (%p287) target = $region16
        $region15: #{tpu_custom_call.1} parent=11 // pred_region
          _
        $region16: #{tpu_custom_call.1} parent=11 // pred_fallthru
          _
        // Predicated region
        $region17: #{tpu_custom_call.1} parent=11 // pred_check
          %p290 = pneg %p76
        $region18: #{tpu_custom_call.1} parent=11 // pred_check_branch
          %292 = sbr.rel (%p290) target = $region20
        $region19: #{tpu_custom_call.1} parent=11 // pred_region
          _
        $region20: #{tpu_custom_call.1} parent=11 // pred_fallthru
          _
        // Predicated region
        $region21: #{tpu_custom_call.1} parent=11 // pred_check
          %p293 = pneg %p97
        $region22: #{tpu_custom_call.1} parent=11 // pred_check_branch
          %295 = sbr.rel (%p293) target = $region24
        $region23: #{tpu_custom_call.1} parent=11 // pred_region
          _
        $region24: #{tpu_custom_call.1} parent=11 // pred_fallthru
          _
        // Predicated region
        $region25: #{tpu_custom_call.1} parent=11 // pred_check
          %p296 = pneg %p118
        $region26: #{tpu_custom_call.1} parent=11 // pred_check_branch
          %298 = sbr.rel (%p296) target = $region28
        $region27: #{tpu_custom_call.1} parent=11 // pred_region
          _
        $region28: #{tpu_custom_call.1} parent=11 // pred_fallthru
          _
        // Predicated region
        $region29: #{tpu_custom_call.1} parent=11 // pred_check
          %p299 = pneg %p139
        $region30: #{tpu_custom_call.1} parent=11 // pred_check_branch
          %301 = sbr.rel (%p299) target = $region32
        $region31: #{tpu_custom_call.1} parent=11 // pred_region
          _
        $region32: #{tpu_custom_call.1} parent=11 // pred_fallthru
          _
        // Predicated region
        $region33: #{tpu_custom_call.1} parent=11 // pred_check
          %p302 = pneg %p160
        $region34: #{tpu_custom_call.1} parent=11 // pred_check_branch
          %304 = sbr.rel (%p302) target = $region36
        $region35: #{tpu_custom_call.1} parent=11 // pred_region
          _
        $region36: #{tpu_custom_call.1} parent=11 // pred_fallthru
          _
      $region12: #{tpu_custom_call.1} parent=5 // pred_fallthru
        _
      %p305 = scmp.lt.s32.totalorder %s22, 4
      // Predicated region
      $region37: #{tpu_custom_call.1} parent=5 // pred_check
        %p306 = pneg %p305
      $region38: #{tpu_custom_call.1} parent=5 // pred_check_branch
        %308 = sbr.rel (%p306) target = $region40
      $region39: #{tpu_custom_call.1} parent=5 // pred_region
        // Predicated region
        $region41: #{tpu_custom_call.1} parent=39 // pred_check
          %p309 = pneg %p182
        $region42: #{tpu_custom_call.1} parent=39 // pred_check_branch
          %311 = sbr.rel (%p309) target = $region44
        $region43: #{tpu_custom_call.1} parent=39 // pred_region
          %s312 = sand.u32 %s172, 1
          %s313 = scalar_lea.sflag [#allocation3], %s312
          %s314 = sand.u32 %s172, 1
          %s315 = smul.addr %s314, 128
          %s316 = scalar_lea.vmem [#allocation2], %s315
          %s317 = smul.u32 4, %s30
          %s319 = ssub.s32 2048, 2048
          %320 = vsyncadd %s313, %s319
          %s321 = smul.addr %s29, 32
          %s322 = sadd.s32 %s317, %s321
          %s323 = smul.addr %s322, 128
          %s324 = scalar_lea.hbm %s6, %s323
          %s325 = sshll.u32 %s316, 4
          %s326 = int_to_ptr.vmem [resolvable:$true] %s325
          %331 = dma.hbm_to_vmem [thread:$0]  %s324, 2048, %s326, %s313, 1024, 512, 32
        $region44: #{tpu_custom_call.1} parent=39 // pred_fallthru
          _
      $region40: #{tpu_custom_call.1} parent=5 // pred_fallthru
        _
      %p332 = scmp.le.s32.totalorder 1, %s22
      %p333 = scmp.lt.s32.totalorder %s22, 5
      %p334 = pnand %p332, %p333
      %p335 = pneg %p334
      // Predicated region
      $region45: #{tpu_custom_call.1} parent=5 // pred_check
        _
      $region46: #{tpu_custom_call.1} parent=5 // pred_check_branch
        %337 = sbr.rel (%p334) target = $region48
      $region47: #{tpu_custom_call.1} parent=5 // pred_region
        %s338 = ssub.s32 %s22, 1
        %s339 = sand.u32 %s175, 1
        %s340 = scalar_lea.sflag [#allocation3], %s339
        %s341 = sand.u32 %s175, 1
        %s342 = smul.addr %s341, 128
        %s343 = scalar_lea.vmem [#allocation2], %s342
        // Predicated region
        $region49: #{tpu_custom_call.1} parent=47 // pred_check
          %p344 = pneg %p188
        $region50: #{tpu_custom_call.1} parent=47 // pred_check_branch
          %346 = sbr.rel (%p344) target = $region52
        $region51: #{tpu_custom_call.1} parent=47 // pred_region
          %347 = dma.done %s340, 2048
        $region52: #{tpu_custom_call.1} parent=47 // pred_fallthru
          _
        %p348 = pneg %p55
        %p349 = pneg %p52
        %p350 = pneg %p76
        %p351 = pneg %p73
        %p352 = pneg %p97
        %p353 = pneg %p94
        %p354 = pneg %p118
        %p355 = pneg %p115
        %p356 = pneg %p139
        %p357 = pneg %p136
        %p358 = pneg %p160
        %p359 = pneg %p157
        %s360 = sand.u32 %s175, 1
        %s361 = scalar_lea.sflag [#allocation3], %s360
        %s362 = sand.u32 %s175, 1
        %s363 = smul.addr %s362, 128
        %s364 = scalar_lea.vmem [#allocation2], %s363
        %p365 = pneg %p188
        %p366 = pneg %p185
        %p367 = pneg %p216
        %p368 = pneg %p213
        %s369 = smul.u32 64, %s32
        %p370 = scmp.lt.s32.totalorder %s31, 1
        %s371 = scalar_select %p370, %s31, 1
        %p372 = scmp.lt.s32.totalorder %s369, 127
        %s373 = scalar_select %p372, %s369, 127
        %s374 = smul.addr %s371, 128
        %s375 = sadd.s32 %s373, %s374
        %s376 = smul.addr %s375, 4
        %s377 = scalar_lea.vmem %s7, %s376
        %p378 = pneg %p244
        %p379 = pneg %p241
        %s380 = sand.u32 %s231, 1
        %s381 = scalar_lea.sflag [#allocation4], %s380
        %s382 = sand.u32 %s231, 1
        %s383 = smul.addr %s382, 32
        %s384 = scalar_lea.vmem [#allocation5], %s383
        %p385 = pneg %p272
        %p386 = pneg %p269
        %s387 = smul.u32 64, %s32
        %p388 = scmp.lt.s32.totalorder %s31, 1
        %s389 = scalar_select %p388, %s31, 1
        %p390 = scmp.lt.s32.totalorder %s387, 127
        %s391 = scalar_select %p390, %s387, 127
        %s392 = smul.addr %s389, 128
        %s393 = sadd.s32 %s391, %s392
        %s394 = smul.addr %s393, 4
        %s395 = scalar_lea.vmem %s9, %s394
        %s396 = smul.u32 4, %s32
        %s397 = smul.u32 64, %s32
        %p398 = scmp.lt.s32.totalorder %s31, 1
        %s399 = scalar_select %p398, %s31, 1
        %p400 = scmp.lt.s32.totalorder %s397, 127
        %s401 = scalar_select %p400, %s397, 127
        %s402 = smul.addr %s399, 128
        %s403 = sadd.s32 %s401, %s402
        %s404 = smul.addr %s403, 4
        %s405 = scalar_lea.vmem %s7, %s404
        %s406 = smul.u32 64, %s32
        %s407 = smul.u32 4, %s32
        %s408 = smul.u32 64, %s32
        %p409 = scmp.lt.s32.totalorder %s31, 1
        %s410 = scalar_select %p409, %s31, 1
        %p411 = scmp.lt.s32.totalorder %s408, 127
        %s412 = scalar_select %p411, %s408, 127
        %s413 = smul.addr %s410, 128
        %s414 = sadd.s32 %s412, %s413
        %s415 = smul.addr %s414, 4
        %s416 = scalar_lea.vmem %s9, %s415
        %s417 = smul.u32 64, %s32
        %v419 = vld [vmem:[%s343] sm:$0xff]
        %v420 = vld [vmem:[%s343 + $0x8] sm:$0xff]
        %v421 = vld [vmem:[%s343 + $0x10] sm:$0xff]
        %v422 = vld [vmem:[%s343 + $0x18] sm:$0xff]
        %v423 = vld [vmem:[%s343 + $0x20] sm:$0xff]
        %v424 = vld [vmem:[%s343 + $0x28] sm:$0xff]
        %v425 = vld [vmem:[%s343 + $0x30] sm:$0xff]
        %v426 = vld [vmem:[%s343 + $0x38] sm:$0xff]
        %v427 = vld [vmem:[%s343 + $0x40] sm:$0xff]
        %v428 = vld [vmem:[%s343 + $0x48] sm:$0xff]
        %v429 = vld [vmem:[%s343 + $0x50] sm:$0xff]
        %v430 = vld [vmem:[%s343 + $0x58] sm:$0xff]
        %v431 = vld [vmem:[%s343 + $0x60] sm:$0xff]
        %v432 = vld [vmem:[%s343 + $0x68] sm:$0xff]
        %v433 = vld [vmem:[%s343 + $0x70] sm:$0xff]
        %v434 = vld [vmem:[%s343 + $0x78] sm:$0xff]
        %v435 = vpack.c.bf16 %v423, %v419
        %v436 = vpack.c.bf16 %v424, %v420
        %v437 = vpack.c.bf16 %v425, %v421
        %v438 = vpack.c.bf16 %v426, %v422
        %v439 = vpack.c.bf16 %v431, %v427
        %v440 = vpack.c.bf16 %v432, %v428
        %v441 = vpack.c.bf16 %v433, %v429
        %v442 = vpack.c.bf16 %v434, %v430
        %v443 = vld [vmem:[%s0] sm:$0xf]
        %v444 = vld [vmem:[%s0 + $0x4] sm:$0xf]
        %v445 = vld [vmem:[%s1] sm:$0xff]
        %v446 = vld [vmem:[%s1 + $0x8] sm:$0xff]
        %448 = vset.pattern.permute.xlu0 0
        %449 = vperm.xlu0 %448, %v445
        %v450 = vpop.permute.xlu0 %449
        %453 = vset.pattern.permute.xlu0 0
        %454 = vperm.xlu0 %453, %v446
        %v455 = vpop.permute.xlu0 %454
        %v459 = vunpack.c.l.b16 %v443
        %v460 = vunpack.c.l.b16 %v444
        %v461 = vpack.c.b16 %v460, %v459
        %vm462 = vcmask 261120
        %v464 = vsel %vm462, %v461, 0
        %466 = vmatprep.subr.bf16.mxu0 %v436
        %467 = vmatpush1.bf16.msra.mxu0 %v435
        %468 = vmatprep.subr.bf16.mxu0 %v440
        %469 = vmatpush1.bf16.msra.mxu0 %v439
        %470 = vmatprep.subr.bf16.mxu0 0
        %471 = vmatpush1.bf16.msra.mxu0 0
        %472 = vmatprep.subr.bf16.mxu0 0
        %473 = vmatpush1.bf16.msra.mxu0 0
        %474 = vmatprep.subr.bf16.mxu0 0
        %475 = vmatpush1.bf16.msra.mxu0 0
        %476 = vmatprep.subr.bf16.mxu0 0
        %477 = vmatpush1.bf16.msra.mxu0 0
        %478 = vmatprep.subr.bf16.mxu0 0
        %479 = vmatpush1.bf16.msra.mxu0 0
        %480 = vmatprep.subr.bf16.mxu0 0
        %481 = vmatpush1.bf16.msra.mxu0 0
        %482 = vmatprep.subr.bf16.mxu0 0
        %483 = vmatpush1.bf16.msra.mxu0 0
        %484 = vmatprep.subr.bf16.mxu0 0
        %485 = vmatpush1.bf16.msra.mxu0 0
        %486 = vmatprep.subr.bf16.mxu0 0
        %487 = vmatpush1.bf16.msra.mxu0 0
        %488 = vmatprep.subr.bf16.mxu0 0
        %489 = vmatpush1.bf16.msra.mxu0 0
        %490 = vmatprep.subr.bf16.mxu0 0
        %491 = vmatpush1.bf16.msra.mxu0 0
        %492 = vmatprep.subr.bf16.mxu0 0
        %493 = vmatpush1.bf16.msra.mxu0 0
        %494 = vmatprep.subr.bf16.mxu0 0
        %495 = vmatpush1.bf16.msra.mxu0 0
        %496 = vmatprep.subr.bf16.mxu0 0
        %497 = vmatpush1.bf16.msra.mxu0 0
        %498 = vmatprep.mubr.bf16.mxu0 0
        %499 = vmatmul.mubr.bf16.gmra.mrb[0].mxu0 %v464
        %v500 = vpop.f32.mrb[0].mxu0
        %v501 = vadd.f32 %v450, %v500
        %v502 = vpop.f32.mrb[0].mxu0
        %v503 = vadd.f32 %v450, %v502
        %v504 = vpop.f32.mrb[0].mxu0
        %v505 = vadd.f32 %v455, %v504
        %v506 = vpop.f32.mrb[0].mxu0
        %v507 = vadd.f32 %v455, %v506
        %508 = vdwg.mxu0
        %509 = vmatprep.subr.bf16.mxu0 %v438
        %510 = vmatpush1.bf16.msra.mxu0 %v437
        %511 = vmatprep.subr.bf16.mxu0 %v442
        %512 = vmatpush1.bf16.msra.mxu0 %v441
        %513 = vmatprep.subr.bf16.mxu0 0
        %514 = vmatpush1.bf16.msra.mxu0 0
        %515 = vmatprep.subr.bf16.mxu0 0
        %516 = vmatpush1.bf16.msra.mxu0 0
        %517 = vmatprep.subr.bf16.mxu0 0
        %518 = vmatpush1.bf16.msra.mxu0 0
        %519 = vmatprep.subr.bf16.mxu0 0
        %520 = vmatpush1.bf16.msra.mxu0 0
        %521 = vmatprep.subr.bf16.mxu0 0
        %522 = vmatpush1.bf16.msra.mxu0 0
        %523 = vmatprep.subr.bf16.mxu0 0
        %524 = vmatpush1.bf16.msra.mxu0 0
        %525 = vmatprep.subr.bf16.mxu0 0
        %526 = vmatpush1.bf16.msra.mxu0 0
        %527 = vmatprep.subr.bf16.mxu0 0
        %528 = vmatpush1.bf16.msra.mxu0 0
        %529 = vmatprep.subr.bf16.mxu0 0
        %530 = vmatpush1.bf16.msra.mxu0 0
        %531 = vmatprep.subr.bf16.mxu0 0
        %532 = vmatpush1.bf16.msra.mxu0 0
        %533 = vmatprep.subr.bf16.mxu0 0
        %534 = vmatpush1.bf16.msra.mxu0 0
        %535 = vmatprep.subr.bf16.mxu0 0
        %536 = vmatpush1.bf16.msra.mxu0 0
        %537 = vmatprep.subr.bf16.mxu0 0
        %538 = vmatpush1.bf16.msra.mxu0 0
        %539 = vmatprep.subr.bf16.mxu0 0
        %540 = vmatpush1.bf16.msra.mxu0 0
        %541 = vmatprep.mubr.bf16.mxu0 0
        %542 = vmatmul.mubr.bf16.gmra.mrb[0].mxu0 %v464
        %v543 = vpop.f32.mrb[0].mxu0
        %v544 = vadd.f32 %v450, %v543
        %v545 = vpop.f32.mrb[0].mxu0
        %v546 = vadd.f32 %v450, %v545
        %v547 = vpop.f32.mrb[0].mxu0
        %v548 = vadd.f32 %v455, %v547
        %v549 = vpop.f32.mrb[0].mxu0
        %v550 = vadd.f32 %v455, %v549
        %551 = vdwg.mxu0
        %v552 = vld [vmem:[%s2] sm:$0xf]
        %v553 = vld [vmem:[%s2 + $0x4] sm:$0xf]
        %v554 = vld [vmem:[%s3] sm:$0xff]
        %v555 = vld [vmem:[%s3 + $0x8] sm:$0xff]
        %557 = vset.pattern.permute.xlu0 0
        %558 = vperm.xlu0 %557, %v554
        %v559 = vpop.permute.xlu0 %558
        %562 = vset.pattern.permute.xlu0 0
        %563 = vperm.xlu0 %562, %v555
        %v564 = vpop.permute.xlu0 %563
        %v568 = vunpack.c.l.b16 %v552
        %v569 = vunpack.c.l.b16 %v553
        %v570 = vpack.c.b16 %v569, %v568
        %v572 = vsel %vm462, %v570, 0
        %574 = vmatprep.subr.bf16.mxu0 %v436
        %575 = vmatpush1.bf16.msra.mxu0 %v435
        %576 = vmatprep.subr.bf16.mxu0 %v440
        %577 = vmatpush1.bf16.msra.mxu0 %v439
        %578 = vmatprep.subr.bf16.mxu0 0
        %579 = vmatpush1.bf16.msra.mxu0 0
        %580 = vmatprep.subr.bf16.mxu0 0
        %581 = vmatpush1.bf16.msra.mxu0 0
        %582 = vmatprep.subr.bf16.mxu0 0
        %583 = vmatpush1.bf16.msra.mxu0 0
        %584 = vmatprep.subr.bf16.mxu0 0
        %585 = vmatpush1.bf16.msra.mxu0 0
        %586 = vmatprep.subr.bf16.mxu0 0
        %587 = vmatpush1.bf16.msra.mxu0 0
        %588 = vmatprep.subr.bf16.mxu0 0
        %589 = vmatpush1.bf16.msra.mxu0 0
        %590 = vmatprep.subr.bf16.mxu0 0
        %591 = vmatpush1.bf16.msra.mxu0 0
        %592 = vmatprep.subr.bf16.mxu0 0
        %593 = vmatpush1.bf16.msra.mxu0 0
        %594 = vmatprep.subr.bf16.mxu0 0
        %595 = vmatpush1.bf16.msra.mxu0 0
        %596 = vmatprep.subr.bf16.mxu0 0
        %597 = vmatpush1.bf16.msra.mxu0 0
        %598 = vmatprep.subr.bf16.mxu0 0
        %599 = vmatpush1.bf16.msra.mxu0 0
        %600 = vmatprep.subr.bf16.mxu0 0
        %601 = vmatpush1.bf16.msra.mxu0 0
        %602 = vmatprep.subr.bf16.mxu0 0
        %603 = vmatpush1.bf16.msra.mxu0 0
        %604 = vmatprep.subr.bf16.mxu0 0
        %605 = vmatpush1.bf16.msra.mxu0 0
        %606 = vmatprep.mubr.bf16.mxu0 0
        %607 = vmatmul.mubr.bf16.gmra.mrb[0].mxu0 %v572
        %v608 = vpop.f32.mrb[0].mxu0
        %v609 = vadd.f32 %v559, %v608
        %v610 = vpop.f32.mrb[0].mxu0
        %v611 = vadd.f32 %v559, %v610
        %v612 = vpop.f32.mrb[0].mxu0
        %v613 = vadd.f32 %v564, %v612
        %v614 = vpop.f32.mrb[0].mxu0
        %v615 = vadd.f32 %v564, %v614
        %616 = vdwg.mxu0
        %617 = vmatprep.subr.bf16.mxu0 %v438
        %618 = vmatpush1.bf16.msra.mxu0 %v437
        %619 = vmatprep.subr.bf16.mxu0 %v442
        %620 = vmatpush1.bf16.msra.mxu0 %v441
        %621 = vmatprep.subr.bf16.mxu0 0
        %622 = vmatpush1.bf16.msra.mxu0 0
        %623 = vmatprep.subr.bf16.mxu0 0
        %624 = vmatpush1.bf16.msra.mxu0 0
        %625 = vmatprep.subr.bf16.mxu0 0
        %626 = vmatpush1.bf16.msra.mxu0 0
        %627 = vmatprep.subr.bf16.mxu0 0
        %628 = vmatpush1.bf16.msra.mxu0 0
        %629 = vmatprep.subr.bf16.mxu0 0
        %630 = vmatpush1.bf16.msra.mxu0 0
        %631 = vmatprep.subr.bf16.mxu0 0
        %632 = vmatpush1.bf16.msra.mxu0 0
        %633 = vmatprep.subr.bf16.mxu0 0
        %634 = vmatpush1.bf16.msra.mxu0 0
        %635 = vmatprep.subr.bf16.mxu0 0
        %636 = vmatpush1.bf16.msra.mxu0 0
        %637 = vmatprep.subr.bf16.mxu0 0
        %638 = vmatpush1.bf16.msra.mxu0 0
        %639 = vmatprep.subr.bf16.mxu0 0
        %640 = vmatpush1.bf16.msra.mxu0 0
        %641 = vmatprep.subr.bf16.mxu0 0
        %642 = vmatpush1.bf16.msra.mxu0 0
        %643 = vmatprep.subr.bf16.mxu0 0
        %644 = vmatpush1.bf16.msra.mxu0 0
        %645 = vmatprep.subr.bf16.mxu0 0
        %646 = vmatpush1.bf16.msra.mxu0 0
        %647 = vmatprep.subr.bf16.mxu0 0
        %648 = vmatpush1.bf16.msra.mxu0 0
        %649 = vmatprep.mubr.bf16.mxu0 0
        %650 = vmatmul.mubr.bf16.gmra.mrb[0].mxu0 %v572
        %v651 = vpop.f32.mrb[0].mxu0
        %v652 = vadd.f32 %v559, %v651
        %v653 = vpop.f32.mrb[0].mxu0
        %v654 = vadd.f32 %v559, %v653
        %v655 = vpop.f32.mrb[0].mxu0
        %v656 = vadd.f32 %v564, %v655
        %v657 = vpop.f32.mrb[0].mxu0
        %v658 = vadd.f32 %v564, %v657
        %659 = vdwg.mxu0
        %v660 = vld [vmem:[%s4] sm:$0xf]
        %v661 = vld [vmem:[%s4 + $0x4] sm:$0xf]
        %v662 = vld [vmem:[%s4 + $0x8] sm:$0xf]
        %v663 = vld [vmem:[%s4 + $0xc] sm:$0xf]
        %v664 = vld [vmem:[%s5] sm:$0xff]
        %v665 = vld [vmem:[%s5 + $0x8] sm:$0xff]
        %v666 = vld [vmem:[%s5 + $0x10] sm:$0xff]
        %v667 = vld [vmem:[%s5 + $0x18] sm:$0xff]
        %669 = vset.pattern.permute.xlu0 0
        %670 = vperm.xlu0 %669, %v664
        %v671 = vpop.permute.xlu0 %670
        %674 = vset.pattern.permute.xlu0 0
        %675 = vperm.xlu0 %674, %v665
        %v676 = vpop.permute.xlu0 %675
        %679 = vset.pattern.permute.xlu0 0
        %680 = vperm.xlu0 %679, %v666
        %v681 = vpop.permute.xlu0 %680
        %684 = vset.pattern.permute.xlu0 0
        %685 = vperm.xlu0 %684, %v667
        %v686 = vpop.permute.xlu0 %685
        %v692 = vunpack.c.l.b16 %v660
        %v693 = vunpack.c.l.b16 %v661
        %v694 = vunpack.c.l.b16 %v662
        %v695 = vunpack.c.l.b16 %v663
        %v696 = vpack.c.b16 %v693, %v692
        %v697 = vpack.c.b16 %v695, %v694
        %v699 = vsel %vm462, %v696, 0
        %v702 = vsel %vm462, %v697, 0
        %704 = vmatprep.subr.bf16.mxu0 %v436
        %705 = vmatpush1.bf16.msra.mxu0 %v435
        %706 = vmatprep.subr.bf16.mxu0 %v440
        %707 = vmatpush1.bf16.msra.mxu0 %v439
        %708 = vmatprep.subr.bf16.mxu0 0
        %709 = vmatpush1.bf16.msra.mxu0 0
        %710 = vmatprep.subr.bf16.mxu0 0
        %711 = vmatpush1.bf16.msra.mxu0 0
        %712 = vmatprep.subr.bf16.mxu0 0
        %713 = vmatpush1.bf16.msra.mxu0 0
        %714 = vmatprep.subr.bf16.mxu0 0
        %715 = vmatpush1.bf16.msra.mxu0 0
        %716 = vmatprep.subr.bf16.mxu0 0
        %717 = vmatpush1.bf16.msra.mxu0 0
        %718 = vmatprep.subr.bf16.mxu0 0
        %719 = vmatpush1.bf16.msra.mxu0 0
        %720 = vmatprep.subr.bf16.mxu0 0
        %721 = vmatpush1.bf16.msra.mxu0 0
        %722 = vmatprep.subr.bf16.mxu0 0
        %723 = vmatpush1.bf16.msra.mxu0 0
        %724 = vmatprep.subr.bf16.mxu0 0
        %725 = vmatpush1.bf16.msra.mxu0 0
        %726 = vmatprep.subr.bf16.mxu0 0
        %727 = vmatpush1.bf16.msra.mxu0 0
        %728 = vmatprep.subr.bf16.mxu0 0
        %729 = vmatpush1.bf16.msra.mxu0 0
        %730 = vmatprep.subr.bf16.mxu0 0
        %731 = vmatpush1.bf16.msra.mxu0 0
        %732 = vmatprep.subr.bf16.mxu0 0
        %733 = vmatpush1.bf16.msra.mxu0 0
        %734 = vmatprep.subr.bf16.mxu0 0
        %735 = vmatpush1.bf16.msra.mxu0 0
        %736 = vmatprep.mubr.bf16.mxu0 0
        %737 = vmatmul.mubr.bf16.gmra.mrb[0].mxu0 %v699
        %v738 = vpop.f32.mrb[0].mxu0
        %v739 = vadd.f32 %v671, %v738
        %v740 = vpop.f32.mrb[0].mxu0
        %v741 = vadd.f32 %v671, %v740
        %v742 = vpop.f32.mrb[0].mxu0
        %v743 = vadd.f32 %v676, %v742
        %v744 = vpop.f32.mrb[0].mxu0
        %v745 = vadd.f32 %v676, %v744
        %746 = vmatprep.mubr.bf16.mxu0 0
        %747 = vmatmul.mubr.bf16.gmra.mrb[0].mxu0 %v702
        %v748 = vpop.f32.mrb[0].mxu0
        %v749 = vadd.f32 %v681, %v748
        %v750 = vpop.f32.mrb[0].mxu0
        %v751 = vadd.f32 %v681, %v750
        %v752 = vpop.f32.mrb[0].mxu0
        %v753 = vadd.f32 %v686, %v752
        %v754 = vpop.f32.mrb[0].mxu0
        %v755 = vadd.f32 %v686, %v754
        %756 = vdwg.mxu0
        %757 = vmatprep.subr.bf16.mxu0 %v438
        %758 = vmatpush1.bf16.msra.mxu0 %v437
        %759 = vmatprep.subr.bf16.mxu0 %v442
        %760 = vmatpush1.bf16.msra.mxu0 %v441
        %761 = vmatprep.subr.bf16.mxu0 0
        %762 = vmatpush1.bf16.msra.mxu0 0
        %763 = vmatprep.subr.bf16.mxu0 0
        %764 = vmatpush1.bf16.msra.mxu0 0
        %765 = vmatprep.subr.bf16.mxu0 0
        %766 = vmatpush1.bf16.msra.mxu0 0
        %767 = vmatprep.subr.bf16.mxu0 0
        %768 = vmatpush1.bf16.msra.mxu0 0
        %769 = vmatprep.subr.bf16.mxu0 0
        %770 = vmatpush1.bf16.msra.mxu0 0
        %771 = vmatprep.subr.bf16.mxu0 0
        %772 = vmatpush1.bf16.msra.mxu0 0
        %773 = vmatprep.subr.bf16.mxu0 0
        %774 = vmatpush1.bf16.msra.mxu0 0
        %775 = vmatprep.subr.bf16.mxu0 0
        %776 = vmatpush1.bf16.msra.mxu0 0
        %777 = vmatprep.subr.bf16.mxu0 0
        %778 = vmatpush1.bf16.msra.mxu0 0
        %779 = vmatprep.subr.bf16.mxu0 0
        %780 = vmatpush1.bf16.msra.mxu0 0
        %781 = vmatprep.subr.bf16.mxu0 0
        %782 = vmatpush1.bf16.msra.mxu0 0
        %783 = vmatprep.subr.bf16.mxu0 0
        %784 = vmatpush1.bf16.msra.mxu0 0
        %785 = vmatprep.subr.bf16.mxu0 0
        %786 = vmatpush1.bf16.msra.mxu0 0
        %787 = vmatprep.subr.bf16.mxu0 0
        %788 = vmatpush1.bf16.msra.mxu0 0
        %789 = vmatprep.mubr.bf16.mxu0 0
        %790 = vmatmul.mubr.bf16.gmra.mrb[0].mxu0 %v699
        %v791 = vpop.f32.mrb[0].mxu0
        %v792 = vadd.f32 %v671, %v791
        %v793 = vpop.f32.mrb[0].mxu0
        %v794 = vadd.f32 %v671, %v793
        %v795 = vpop.f32.mrb[0].mxu0
        %v796 = vadd.f32 %v676, %v795
        %v797 = vpop.f32.mrb[0].mxu0
        %v798 = vadd.f32 %v676, %v797
        %799 = vmatprep.mubr.bf16.mxu0 0
        %800 = vmatmul.mubr.bf16.gmra.mrb[0].mxu0 %v702
        %v801 = vpop.f32.mrb[0].mxu0
        %v802 = vadd.f32 %v681, %v801
        %v803 = vpop.f32.mrb[0].mxu0
        %v804 = vadd.f32 %v681, %v803
        %v805 = vpop.f32.mrb[0].mxu0
        %v806 = vadd.f32 %v686, %v805
        %v807 = vpop.f32.mrb[0].mxu0
        %v808 = vadd.f32 %v686, %v807
        %809 = vdwg.mxu0
        %810 = vxpose.xlu0.b32.start [1/16] %v501, 128
        %811 = vxpose.xlu0.b32.cont [2/16] %v505, 128
        %812 = vxpose.xlu0.b32.cont [3/16] 0.0, 128
        %813 = vxpose.xlu0.b32.cont [4/16] 0.0, 128
        %814 = vxpose.xlu0.b32.cont [5/16] 0.0, 128
        %815 = vxpose.xlu0.b32.cont [6/16] 0.0, 128
        %816 = vxpose.xlu0.b32.cont [7/16] 0.0, 128
        %817 = vxpose.xlu0.b32.cont [8/16] 0.0, 128
        %818 = vxpose.xlu0.b32.cont [9/16] 0.0, 128
        %819 = vxpose.xlu0.b32.cont [10/16] 0.0, 128
        %820 = vxpose.xlu0.b32.cont [11/16] 0.0, 128
        %821 = vxpose.xlu0.b32.cont [12/16] 0.0, 128
        %822 = vxpose.xlu0.b32.cont [13/16] 0.0, 128
        %823 = vxpose.xlu0.b32.cont [14/16] 0.0, 128
        %824 = vxpose.xlu0.b32.cont [15/16] 0.0, 128
        %825 = vxpose.xlu0.b32.end [16/16] 0.0, 128
        %v826 = vpop.trf.xlu0
        %v827 = vpop.trf.xlu0
        %v828 = vpop.trf.xlu0
        %v829 = vpop.trf.xlu0
        %v830 = vpop.trf.xlu0
        %v831 = vpop.trf.xlu0
        %v832 = vpop.trf.xlu0
        %v833 = vpop.trf.xlu0
        %v834 = vpop.trf.xlu0
        %v835 = vpop.trf.xlu0
        %v836 = vpop.trf.xlu0
        %v837 = vpop.trf.xlu0
        %v838 = vpop.trf.xlu0
        %v839 = vpop.trf.xlu0
        %v840 = vpop.trf.xlu0
        %v841 = vpop.trf.xlu0
        %842 = vxpose.xlu0.b32.start [1/16] %v503, 128
        %843 = vxpose.xlu0.b32.cont [2/16] %v507, 128
        %844 = vxpose.xlu0.b32.cont [3/16] 0.0, 128
        %845 = vxpose.xlu0.b32.cont [4/16] 0.0, 128
        %846 = vxpose.xlu0.b32.cont [5/16] 0.0, 128
        %847 = vxpose.xlu0.b32.cont [6/16] 0.0, 128
        %848 = vxpose.xlu0.b32.cont [7/16] 0.0, 128
        %849 = vxpose.xlu0.b32.cont [8/16] 0.0, 128
        %850 = vxpose.xlu0.b32.cont [9/16] 0.0, 128
        %851 = vxpose.xlu0.b32.cont [10/16] 0.0, 128
        %852 = vxpose.xlu0.b32.cont [11/16] 0.0, 128
        %853 = vxpose.xlu0.b32.cont [12/16] 0.0, 128
        %854 = vxpose.xlu0.b32.cont [13/16] 0.0, 128
        %855 = vxpose.xlu0.b32.cont [14/16] 0.0, 128
        %856 = vxpose.xlu0.b32.cont [15/16] 0.0, 128
        %857 = vxpose.xlu0.b32.end [16/16] 0.0, 128
        %v858 = vpop.trf.xlu0
        %v859 = vpop.trf.xlu0
        %v860 = vpop.trf.xlu0
        %v861 = vpop.trf.xlu0
        %v862 = vpop.trf.xlu0
        %v863 = vpop.trf.xlu0
        %v864 = vpop.trf.xlu0
        %v865 = vpop.trf.xlu0
        %v866 = vpop.trf.xlu0
        %v867 = vpop.trf.xlu0
        %v868 = vpop.trf.xlu0
        %v869 = vpop.trf.xlu0
        %v870 = vpop.trf.xlu0
        %v871 = vpop.trf.xlu0
        %v872 = vpop.trf.xlu0
        %v873 = vpop.trf.xlu0
        %874 = vxpose.xlu0.b32.start [1/16] %v544, 128
        %875 = vxpose.xlu0.b32.cont [2/16] %v548, 128
        %876 = vxpose.xlu0.b32.cont [3/16] 0.0, 128
        %877 = vxpose.xlu0.b32.cont [4/16] 0.0, 128
        %878 = vxpose.xlu0.b32.cont [5/16] 0.0, 128
        %879 = vxpose.xlu0.b32.cont [6/16] 0.0, 128
        %880 = vxpose.xlu0.b32.cont [7/16] 0.0, 128
        %881 = vxpose.xlu0.b32.cont [8/16] 0.0, 128
        %882 = vxpose.xlu0.b32.cont [9/16] 0.0, 128
        %883 = vxpose.xlu0.b32.cont [10/16] 0.0, 128
        %884 = vxpose.xlu0.b32.cont [11/16] 0.0, 128
        %885 = vxpose.xlu0.b32.cont [12/16] 0.0, 128
        %886 = vxpose.xlu0.b32.cont [13/16] 0.0, 128
        %887 = vxpose.xlu0.b32.cont [14/16] 0.0, 128
        %888 = vxpose.xlu0.b32.cont [15/16] 0.0, 128
        %889 = vxpose.xlu0.b32.end [16/16] 0.0, 128
        %v890 = vpop.trf.xlu0
        %v891 = vpop.trf.xlu0
        %v892 = vpop.trf.xlu0
        %v893 = vpop.trf.xlu0
        %v894 = vpop.trf.xlu0
        %v895 = vpop.trf.xlu0
        %v896 = vpop.trf.xlu0
        %v897 = vpop.trf.xlu0
        %v898 = vpop.trf.xlu0
        %v899 = vpop.trf.xlu0
        %v900 = vpop.trf.xlu0
        %v901 = vpop.trf.xlu0
        %v902 = vpop.trf.xlu0
        %v903 = vpop.trf.xlu0
        %v904 = vpop.trf.xlu0
        %v905 = vpop.trf.xlu0
        %906 = vxpose.xlu0.b32.start [1/16] %v546, 128
        %907 = vxpose.xlu0.b32.cont [2/16] %v550, 128
        %908 = vxpose.xlu0.b32.cont [3/16] 0.0, 128
        %909 = vxpose.xlu0.b32.cont [4/16] 0.0, 128
        %910 = vxpose.xlu0.b32.cont [5/16] 0.0, 128
        %911 = vxpose.xlu0.b32.cont [6/16] 0.0, 128
        %912 = vxpose.xlu0.b32.cont [7/16] 0.0, 128
        %913 = vxpose.xlu0.b32.cont [8/16] 0.0, 128
        %914 = vxpose.xlu0.b32.cont [9/16] 0.0, 128
        %915 = vxpose.xlu0.b32.cont [10/16] 0.0, 128
        %916 = vxpose.xlu0.b32.cont [11/16] 0.0, 128
        %917 = vxpose.xlu0.b32.cont [12/16] 0.0, 128
        %918 = vxpose.xlu0.b32.cont [13/16] 0.0, 128
        %919 = vxpose.xlu0.b32.cont [14/16] 0.0, 128
        %920 = vxpose.xlu0.b32.cont [15/16] 0.0, 128
        %921 = vxpose.xlu0.b32.end [16/16] 0.0, 128
        %v922 = vpop.trf.xlu0
        %v923 = vpop.trf.xlu0
        %v924 = vpop.trf.xlu0
        %v925 = vpop.trf.xlu0
        %v926 = vpop.trf.xlu0
        %v927 = vpop.trf.xlu0
        %v928 = vpop.trf.xlu0
        %v929 = vpop.trf.xlu0
        %v930 = vpop.trf.xlu0
        %v931 = vpop.trf.xlu0
        %v932 = vpop.trf.xlu0
        %v933 = vpop.trf.xlu0
        %v934 = vpop.trf.xlu0
        %v935 = vpop.trf.xlu0
        %v936 = vpop.trf.xlu0
        %v937 = vpop.trf.xlu0
        %v938 = vpack.c.bf16 %v827, %v826
        %v939 = vpack.c.bf16 %v829, %v828
        %v940 = vpack.c.bf16 %v831, %v830
        %v941 = vpack.c.bf16 %v833, %v832
        %v942 = vpack.c.bf16 %v835, %v834
        %v943 = vpack.c.bf16 %v837, %v836
        %v944 = vpack.c.bf16 %v839, %v838
        %v945 = vpack.c.bf16 %v841, %v840
        %v946 = vpack.c.bf16 %v859, %v858
        %v947 = vpack.c.bf16 %v861, %v860
        %v948 = vpack.c.bf16 %v863, %v862
        %v949 = vpack.c.bf16 %v865, %v864
        %v950 = vpack.c.bf16 %v867, %v866
        %v951 = vpack.c.bf16 %v869, %v868
        %v952 = vpack.c.bf16 %v871, %v870
        %v953 = vpack.c.bf16 %v873, %v872
        %v954 = vpack.c.bf16 %v891, %v890
        %v955 = vpack.c.bf16 %v893, %v892
        %v956 = vpack.c.bf16 %v895, %v894
        %v957 = vpack.c.bf16 %v897, %v896
        %v958 = vpack.c.bf16 %v899, %v898
        %v959 = vpack.c.bf16 %v901, %v900
        %v960 = vpack.c.bf16 %v903, %v902
        %v961 = vpack.c.bf16 %v905, %v904
        %v962 = vpack.c.bf16 %v923, %v922
        %v963 = vpack.c.bf16 %v925, %v924
        %v964 = vpack.c.bf16 %v927, %v926
        %v965 = vpack.c.bf16 %v929, %v928
        %v966 = vpack.c.bf16 %v931, %v930
        %v967 = vpack.c.bf16 %v933, %v932
        %v968 = vpack.c.bf16 %v935, %v934
        %v969 = vpack.c.bf16 %v937, %v936
        %v1002 = vunpack.c.l.b16 %v938
        %v1003 = vunpack.c.h.b16 %v938
        %v1004 = vunpack.c.l.b16 %v939
        %v1005 = vunpack.c.h.b16 %v939
        %v1006 = vunpack.c.l.b16 %v940
        %v1007 = vunpack.c.h.b16 %v940
        %v1008 = vunpack.c.l.b16 %v941
        %v1009 = vunpack.c.h.b16 %v941
        %v1010 = vunpack.c.l.b16 %v942
        %v1011 = vunpack.c.h.b16 %v942
        %v1012 = vunpack.c.l.b16 %v943
        %v1013 = vunpack.c.h.b16 %v943
        %v1014 = vunpack.c.l.b16 %v944
        %v1015 = vunpack.c.h.b16 %v944
        %v1016 = vunpack.c.l.b16 %v945
        %v1017 = vunpack.c.h.b16 %v945
        %v1018 = vunpack.c.l.b16 %v946
        %v1019 = vunpack.c.h.b16 %v946
        %v1020 = vunpack.c.l.b16 %v947
        %v1021 = vunpack.c.h.b16 %v947
        %v1022 = vunpack.c.l.b16 %v948
        %v1023 = vunpack.c.h.b16 %v948
        %v1024 = vunpack.c.l.b16 %v949
        %v1025 = vunpack.c.h.b16 %v949
        %v1026 = vunpack.c.l.b16 %v950
        %v1027 = vunpack.c.h.b16 %v950
        %v1028 = vunpack.c.l.b16 %v951
        %v1029 = vunpack.c.h.b16 %v951
        %v1030 = vunpack.c.l.b16 %v952
        %v1031 = vunpack.c.h.b16 %v952
        %v1032 = vunpack.c.l.b16 %v953
        %v1033 = vunpack.c.h.b16 %v953
        %v1034 = vunpack.c.l.b16 %v954
        %v1035 = vunpack.c.h.b16 %v954
        %v1036 = vunpack.c.l.b16 %v955
        %v1037 = vunpack.c.h.b16 %v955
        %v1038 = vunpack.c.l.b16 %v956
        %v1039 = vunpack.c.h.b16 %v956
        %v1040 = vunpack.c.l.b16 %v957
        %v1041 = vunpack.c.h.b16 %v957
        %v1042 = vunpack.c.l.b16 %v958
        %v1043 = vunpack.c.h.b16 %v958
        %v1044 = vunpack.c.l.b16 %v959
        %v1045 = vunpack.c.h.b16 %v959
        %v1046 = vunpack.c.l.b16 %v960
        %v1047 = vunpack.c.h.b16 %v960
        %v1048 = vunpack.c.l.b16 %v961
        %v1049 = vunpack.c.h.b16 %v961
        %v1050 = vunpack.c.l.b16 %v962
        %v1051 = vunpack.c.h.b16 %v962
        %v1052 = vunpack.c.l.b16 %v963
        %v1053 = vunpack.c.h.b16 %v963
        %v1054 = vunpack.c.l.b16 %v964
        %v1055 = vunpack.c.h.b16 %v964
        %v1056 = vunpack.c.l.b16 %v965
        %v1057 = vunpack.c.h.b16 %v965
        %v1058 = vunpack.c.l.b16 %v966
        %v1059 = vunpack.c.h.b16 %v966
        %v1060 = vunpack.c.l.b16 %v967
        %v1061 = vunpack.c.h.b16 %v967
        %v1062 = vunpack.c.l.b16 %v968
        %v1063 = vunpack.c.h.b16 %v968
        %v1064 = vunpack.c.l.b16 %v969
        %v1065 = vunpack.c.h.b16 %v969
        %v1066 = vpack.c.b16 %v1002, %v1002
        %v1067 = vpack.c.b16 %v1003, %v1003
        %v1068 = vpack.c.b16 %v1004, %v1004
        %v1069 = vpack.c.b16 %v1005, %v1005
        %v1070 = vpack.c.b16 %v1006, %v1006
        %v1071 = vpack.c.b16 %v1007, %v1007
        %v1072 = vpack.c.b16 %v1008, %v1008
        %v1073 = vpack.c.b16 %v1009, %v1009
        %v1074 = vpack.c.b16 %v1010, %v1010
        %v1075 = vpack.c.b16 %v1011, %v1011
        %v1076 = vpack.c.b16 %v1012, %v1012
        %v1077 = vpack.c.b16 %v1013, %v1013
        %v1078 = vpack.c.b16 %v1014, %v1014
        %v1079 = vpack.c.b16 %v1015, %v1015
        %v1080 = vpack.c.b16 %v1016, %v1016
        %v1081 = vpack.c.b16 %v1017, %v1017
        %v1082 = vpack.c.b16 %v1018, %v1018
        %v1083 = vpack.c.b16 %v1019, %v1019
        %v1084 = vpack.c.b16 %v1020, %v1020
        %v1085 = vpack.c.b16 %v1021, %v1021
        %v1086 = vpack.c.b16 %v1022, %v1022
        %v1087 = vpack.c.b16 %v1023, %v1023
        %v1088 = vpack.c.b16 %v1024, %v1024
        %v1089 = vpack.c.b16 %v1025, %v1025
        %v1090 = vpack.c.b16 %v1026, %v1026
        %v1091 = vpack.c.b16 %v1027, %v1027
        %v1092 = vpack.c.b16 %v1028, %v1028
        %v1093 = vpack.c.b16 %v1029, %v1029
        %v1094 = vpack.c.b16 %v1030, %v1030
        %v1095 = vpack.c.b16 %v1031, %v1031
        %v1096 = vpack.c.b16 %v1032, %v1032
        %v1097 = vpack.c.b16 %v1033, %v1033
        %v1098 = vpack.c.b16 %v1034, %v1034
        %v1099 = vpack.c.b16 %v1035, %v1035
        %v1100 = vpack.c.b16 %v1036, %v1036
        %v1101 = vpack.c.b16 %v1037, %v1037
        %v1102 = vpack.c.b16 %v1038, %v1038
        %v1103 = vpack.c.b16 %v1039, %v1039
        %v1104 = vpack.c.b16 %v1040, %v1040
        %v1105 = vpack.c.b16 %v1041, %v1041
        %v1106 = vpack.c.b16 %v1042, %v1042
        %v1107 = vpack.c.b16 %v1043, %v1043
        %v1108 = vpack.c.b16 %v1044, %v1044
        %v1109 = vpack.c.b16 %v1045, %v1045
        %v1110 = vpack.c.b16 %v1046, %v1046
        %v1111 = vpack.c.b16 %v1047, %v1047
        %v1112 = vpack.c.b16 %v1048, %v1048
        %v1113 = vpack.c.b16 %v1049, %v1049
        %v1114 = vpack.c.b16 %v1050, %v1050
        %v1115 = vpack.c.b16 %v1051, %v1051
        %v1116 = vpack.c.b16 %v1052, %v1052
        %v1117 = vpack.c.b16 %v1053, %v1053
        %v1118 = vpack.c.b16 %v1054, %v1054
        %v1119 = vpack.c.b16 %v1055, %v1055
        %v1120 = vpack.c.b16 %v1056, %v1056
        %v1121 = vpack.c.b16 %v1057, %v1057
        %v1122 = vpack.c.b16 %v1058, %v1058
        %v1123 = vpack.c.b16 %v1059, %v1059
        %v1124 = vpack.c.b16 %v1060, %v1060
        %v1125 = vpack.c.b16 %v1061, %v1061
        %v1126 = vpack.c.b16 %v1062, %v1062
        %v1127 = vpack.c.b16 %v1063, %v1063
        %v1128 = vpack.c.b16 %v1064, %v1064
        %v1129 = vpack.c.b16 %v1065, %v1065
        %vm1194 = vcmask 125952
        %1195 = vst.msk [vmem:[%s405] sm:$0xf] %vm1194, %v1066
        %1196 = vst.msk [vmem:[%s405 + $0x4] sm:$0xf] %vm1194, %v1067
        %1197 = vst.msk [vmem:[%s405 + $0x8] sm:$0xf] %vm1194, %v1068
        %1198 = vst.msk [vmem:[%s405 + $0xc] sm:$0xf] %vm1194, %v1069
        %1199 = vst.msk [vmem:[%s405 + $0x10] sm:$0xf] %vm1194, %v1070
        %1200 = vst.msk [vmem:[%s405 + $0x14] sm:$0xf] %vm1194, %v1071
        %1201 = vst.msk [vmem:[%s405 + $0x18] sm:$0xf] %vm1194, %v1072
        %1202 = vst.msk [vmem:[%s405 + $0x1c] sm:$0xf] %vm1194, %v1073
        %1203 = vst.msk [vmem:[%s405 + $0x20] sm:$0xf] %vm1194, %v1074
        %1204 = vst.msk [vmem:[%s405 + $0x24] sm:$0xf] %vm1194, %v1075
        %1205 = vst.msk [vmem:[%s405 + $0x28] sm:$0xf] %vm1194, %v1076
        %1206 = vst.msk [vmem:[%s405 + $0x2c] sm:$0xf] %vm1194, %v1077
        %1207 = vst.msk [vmem:[%s405 + $0x30] sm:$0xf] %vm1194, %v1078
        %1208 = vst.msk [vmem:[%s405 + $0x34] sm:$0xf] %vm1194, %v1079
        %1209 = vst.msk [vmem:[%s405 + $0x38] sm:$0xf] %vm1194, %v1080
        %1210 = vst.msk [vmem:[%s405 + $0x3c] sm:$0xf] %vm1194, %v1081
        %1211 = vst.msk [vmem:[%s405 + $0x40] sm:$0xf] %vm1194, %v1082
        %1212 = vst.msk [vmem:[%s405 + $0x44] sm:$0xf] %vm1194, %v1083
        %1213 = vst.msk [vmem:[%s405 + $0x48] sm:$0xf] %vm1194, %v1084
        %1214 = vst.msk [vmem:[%s405 + $0x4c] sm:$0xf] %vm1194, %v1085
        %1215 = vst.msk [vmem:[%s405 + $0x50] sm:$0xf] %vm1194, %v1086
        %1216 = vst.msk [vmem:[%s405 + $0x54] sm:$0xf] %vm1194, %v1087
        %1217 = vst.msk [vmem:[%s405 + $0x58] sm:$0xf] %vm1194, %v1088
        %1218 = vst.msk [vmem:[%s405 + $0x5c] sm:$0xf] %vm1194, %v1089
        %1219 = vst.msk [vmem:[%s405 + $0x60] sm:$0xf] %vm1194, %v1090
        %1220 = vst.msk [vmem:[%s405 + $0x64] sm:$0xf] %vm1194, %v1091
        %1221 = vst.msk [vmem:[%s405 + $0x68] sm:$0xf] %vm1194, %v1092
        %1222 = vst.msk [vmem:[%s405 + $0x6c] sm:$0xf] %vm1194, %v1093
        %1223 = vst.msk [vmem:[%s405 + $0x70] sm:$0xf] %vm1194, %v1094
        %1224 = vst.msk [vmem:[%s405 + $0x74] sm:$0xf] %vm1194, %v1095
        %1225 = vst.msk [vmem:[%s405 + $0x78] sm:$0xf] %vm1194, %v1096
        %1226 = vst.msk [vmem:[%s405 + $0x7c] sm:$0xf] %vm1194, %v1097
        %1227 = vst.msk [vmem:[%s405 + $0x80] sm:$0xf] %vm1194, %v1098
        %1228 = vst.msk [vmem:[%s405 + $0x84] sm:$0xf] %vm1194, %v1099
        %1229 = vst.msk [vmem:[%s405 + $0x88] sm:$0xf] %vm1194, %v1100
        %1230 = vst.msk [vmem:[%s405 + $0x8c] sm:$0xf] %vm1194, %v1101
        %1231 = vst.msk [vmem:[%s405 + $0x90] sm:$0xf] %vm1194, %v1102
        %1232 = vst.msk [vmem:[%s405 + $0x94] sm:$0xf] %vm1194, %v1103
        %1233 = vst.msk [vmem:[%s405 + $0x98] sm:$0xf] %vm1194, %v1104
        %1234 = vst.msk [vmem:[%s405 + $0x9c] sm:$0xf] %vm1194, %v1105
        %1235 = vst.msk [vmem:[%s405 + $0xa0] sm:$0xf] %vm1194, %v1106
        %1236 = vst.msk [vmem:[%s405 + $0xa4] sm:$0xf] %vm1194, %v1107
        %1237 = vst.msk [vmem:[%s405 + $0xa8] sm:$0xf] %vm1194, %v1108
        %1238 = vst.msk [vmem:[%s405 + $0xac] sm:$0xf] %vm1194, %v1109
        %1239 = vst.msk [vmem:[%s405 + $0xb0] sm:$0xf] %vm1194, %v1110
        %1240 = vst.msk [vmem:[%s405 + $0xb4] sm:$0xf] %vm1194, %v1111
        %1241 = vst.msk [vmem:[%s405 + $0xb8] sm:$0xf] %vm1194, %v1112
        %1242 = vst.msk [vmem:[%s405 + $0xbc] sm:$0xf] %vm1194, %v1113
        %1243 = vst.msk [vmem:[%s405 + $0xc0] sm:$0xf] %vm1194, %v1114
        %1244 = vst.msk [vmem:[%s405 + $0xc4] sm:$0xf] %vm1194, %v1115
        %1245 = vst.msk [vmem:[%s405 + $0xc8] sm:$0xf] %vm1194, %v1116
        %1246 = vst.msk [vmem:[%s405 + $0xcc] sm:$0xf] %vm1194, %v1117
        %1247 = vst.msk [vmem:[%s405 + $0xd0] sm:$0xf] %vm1194, %v1118
        %1248 = vst.msk [vmem:[%s405 + $0xd4] sm:$0xf] %vm1194, %v1119
        %1249 = vst.msk [vmem:[%s405 + $0xd8] sm:$0xf] %vm1194, %v1120
        %1250 = vst.msk [vmem:[%s405 + $0xdc] sm:$0xf] %vm1194, %v1121
        %1251 = vst.msk [vmem:[%s405 + $0xe0] sm:$0xf] %vm1194, %v1122
        %1252 = vst.msk [vmem:[%s405 + $0xe4] sm:$0xf] %vm1194, %v1123
        %1253 = vst.msk [vmem:[%s405 + $0xe8] sm:$0xf] %vm1194, %v1124
        %1254 = vst.msk [vmem:[%s405 + $0xec] sm:$0xf] %vm1194, %v1125
        %1255 = vst.msk [vmem:[%s405 + $0xf0] sm:$0xf] %vm1194, %v1126
        %1256 = vst.msk [vmem:[%s405 + $0xf4] sm:$0xf] %vm1194, %v1127
        %1257 = vst.msk [vmem:[%s405 + $0xf8] sm:$0xf] %vm1194, %v1128
        %1258 = vst.msk [vmem:[%s405 + $0xfc] sm:$0xf] %vm1194, %v1129
        %v1259 = vpack.c.bf16 %v613, %v609
        %v1260 = vpack.c.bf16 %v615, %v611
        %v1261 = vpack.c.bf16 %v656, %v652
        %v1262 = vpack.c.bf16 %v658, %v654
        %v1267 = vunpack.c.l.b16 %v1259
        %v1268 = vunpack.c.l.b16 %v1260
        %v1269 = vunpack.c.l.b16 %v1261
        %v1270 = vunpack.c.l.b16 %v1262
        %v1271 = vunpack.c.h.b16 %v1259
        %v1272 = vunpack.c.h.b16 %v1260
        %v1273 = vunpack.c.h.b16 %v1261
        %v1274 = vunpack.c.h.b16 %v1262
        %v1275 = vpack.c.b16 %v1268, %v1267
        %v1276 = vpack.c.b16 %v1270, %v1269
        %v1277 = vpack.c.b16 %v1272, %v1271
        %v1278 = vpack.c.b16 %v1274, %v1273
        %1283 = vst [vmem:[%s384] sm:$0xff] %v1275
        %1284 = vst [vmem:[%s384 + $0x8] sm:$0xff] %v1276
        %1285 = vst [vmem:[%s384 + $0x10] sm:$0xff] %v1277
        %1286 = vst [vmem:[%s384 + $0x18] sm:$0xff] %v1278
        %1287 = vxpose.xlu0.b32.start [1/16] %v739, 128
        %1288 = vxpose.xlu0.b32.cont [2/16] %v743, 128
        %1289 = vxpose.xlu0.b32.cont [3/16] %v749, 128
        %1290 = vxpose.xlu0.b32.cont [4/16] %v753, 128
        %1291 = vxpose.xlu0.b32.cont [5/16] 0.0, 128
        %1292 = vxpose.xlu0.b32.cont [6/16] 0.0, 128
        %1293 = vxpose.xlu0.b32.cont [7/16] 0.0, 128
        %1294 = vxpose.xlu0.b32.cont [8/16] 0.0, 128
        %1295 = vxpose.xlu0.b32.cont [9/16] 0.0, 128
        %1296 = vxpose.xlu0.b32.cont [10/16] 0.0, 128
        %1297 = vxpose.xlu0.b32.cont [11/16] 0.0, 128
        %1298 = vxpose.xlu0.b32.cont [12/16] 0.0, 128
        %1299 = vxpose.xlu0.b32.cont [13/16] 0.0, 128
        %1300 = vxpose.xlu0.b32.cont [14/16] 0.0, 128
        %1301 = vxpose.xlu0.b32.cont [15/16] 0.0, 128
        %1302 = vxpose.xlu0.b32.end [16/16] 0.0, 128
        %v1303 = vpop.trf.xlu0
        %v1304 = vpop.trf.xlu0
        %v1305 = vpop.trf.xlu0
        %v1306 = vpop.trf.xlu0
        %v1307 = vpop.trf.xlu0
        %v1308 = vpop.trf.xlu0
        %v1309 = vpop.trf.xlu0
        %v1310 = vpop.trf.xlu0
        %v1311 = vpop.trf.xlu0
        %v1312 = vpop.trf.xlu0
        %v1313 = vpop.trf.xlu0
        %v1314 = vpop.trf.xlu0
        %v1315 = vpop.trf.xlu0
        %v1316 = vpop.trf.xlu0
        %v1317 = vpop.trf.xlu0
        %v1318 = vpop.trf.xlu0
        %1319 = vxpose.xlu0.b32.start [1/16] %v741, 128
        %1320 = vxpose.xlu0.b32.cont [2/16] %v745, 128
        %1321 = vxpose.xlu0.b32.cont [3/16] %v751, 128
        %1322 = vxpose.xlu0.b32.cont [4/16] %v755, 128
        %1323 = vxpose.xlu0.b32.cont [5/16] 0.0, 128
        %1324 = vxpose.xlu0.b32.cont [6/16] 0.0, 128
        %1325 = vxpose.xlu0.b32.cont [7/16] 0.0, 128
        %1326 = vxpose.xlu0.b32.cont [8/16] 0.0, 128
        %1327 = vxpose.xlu0.b32.cont [9/16] 0.0, 128
        %1328 = vxpose.xlu0.b32.cont [10/16] 0.0, 128
        %1329 = vxpose.xlu0.b32.cont [11/16] 0.0, 128
        %1330 = vxpose.xlu0.b32.cont [12/16] 0.0, 128
        %1331 = vxpose.xlu0.b32.cont [13/16] 0.0, 128
        %1332 = vxpose.xlu0.b32.cont [14/16] 0.0, 128
        %1333 = vxpose.xlu0.b32.cont [15/16] 0.0, 128
        %1334 = vxpose.xlu0.b32.end [16/16] 0.0, 128
        %v1335 = vpop.trf.xlu0
        %v1336 = vpop.trf.xlu0
        %v1337 = vpop.trf.xlu0
        %v1338 = vpop.trf.xlu0
        %v1339 = vpop.trf.xlu0
        %v1340 = vpop.trf.xlu0
        %v1341 = vpop.trf.xlu0
        %v1342 = vpop.trf.xlu0
        %v1343 = vpop.trf.xlu0
        %v1344 = vpop.trf.xlu0
        %v1345 = vpop.trf.xlu0
        %v1346 = vpop.trf.xlu0
        %v1347 = vpop.trf.xlu0
        %v1348 = vpop.trf.xlu0
        %v1349 = vpop.trf.xlu0
        %v1350 = vpop.trf.xlu0
        %1351 = vxpose.xlu0.b32.start [1/16] %v792, 128
        %1352 = vxpose.xlu0.b32.cont [2/16] %v796, 128
        %1353 = vxpose.xlu0.b32.cont [3/16] %v802, 128
        %1354 = vxpose.xlu0.b32.cont [4/16] %v806, 128
        %1355 = vxpose.xlu0.b32.cont [5/16] 0.0, 128
        %1356 = vxpose.xlu0.b32.cont [6/16] 0.0, 128
        %1357 = vxpose.xlu0.b32.cont [7/16] 0.0, 128
        %1358 = vxpose.xlu0.b32.cont [8/16] 0.0, 128
        %1359 = vxpose.xlu0.b32.cont [9/16] 0.0, 128
        %1360 = vxpose.xlu0.b32.cont [10/16] 0.0, 128
        %1361 = vxpose.xlu0.b32.cont [11/16] 0.0, 128
        %1362 = vxpose.xlu0.b32.cont [12/16] 0.0, 128
        %1363 = vxpose.xlu0.b32.cont [13/16] 0.0, 128
        %1364 = vxpose.xlu0.b32.cont [14/16] 0.0, 128
        %1365 = vxpose.xlu0.b32.cont [15/16] 0.0, 128
        %1366 = vxpose.xlu0.b32.end [16/16] 0.0, 128
        %v1367 = vpop.trf.xlu0
        %v1368 = vpop.trf.xlu0
        %v1369 = vpop.trf.xlu0
        %v1370 = vpop.trf.xlu0
        %v1371 = vpop.trf.xlu0
        %v1372 = vpop.trf.xlu0
        %v1373 = vpop.trf.xlu0
        %v1374 = vpop.trf.xlu0
        %v1375 = vpop.trf.xlu0
        %v1376 = vpop.trf.xlu0
        %v1377 = vpop.trf.xlu0
        %v1378 = vpop.trf.xlu0
        %v1379 = vpop.trf.xlu0
        %v1380 = vpop.trf.xlu0
        %v1381 = vpop.trf.xlu0
        %v1382 = vpop.trf.xlu0
        %1383 = vxpose.xlu0.b32.start [1/16] %v794, 128
        %1384 = vxpose.xlu0.b32.cont [2/16] %v798, 128
        %1385 = vxpose.xlu0.b32.cont [3/16] %v804, 128
        %1386 = vxpose.xlu0.b32.cont [4/16] %v808, 128
        %1387 = vxpose.xlu0.b32.cont [5/16] 0.0, 128
        %1388 = vxpose.xlu0.b32.cont [6/16] 0.0, 128
        %1389 = vxpose.xlu0.b32.cont [7/16] 0.0, 128
        %1390 = vxpose.xlu0.b32.cont [8/16] 0.0, 128
        %1391 = vxpose.xlu0.b32.cont [9/16] 0.0, 128
        %1392 = vxpose.xlu0.b32.cont [10/16] 0.0, 128
        %1393 = vxpose.xlu0.b32.cont [11/16] 0.0, 128
        %1394 = vxpose.xlu0.b32.cont [12/16] 0.0, 128
        %1395 = vxpose.xlu0.b32.cont [13/16] 0.0, 128
        %1396 = vxpose.xlu0.b32.cont [14/16] 0.0, 128
        %1397 = vxpose.xlu0.b32.cont [15/16] 0.0, 128
        %1398 = vxpose.xlu0.b32.end [16/16] 0.0, 128
        %v1399 = vpop.trf.xlu0
        %v1400 = vpop.trf.xlu0
        %v1401 = vpop.trf.xlu0
        %v1402 = vpop.trf.xlu0
        %v1403 = vpop.trf.xlu0
        %v1404 = vpop.trf.xlu0
        %v1405 = vpop.trf.xlu0
        %v1406 = vpop.trf.xlu0
        %v1407 = vpop.trf.xlu0
        %v1408 = vpop.trf.xlu0
        %v1409 = vpop.trf.xlu0
        %v1410 = vpop.trf.xlu0
        %v1411 = vpop.trf.xlu0
        %v1412 = vpop.trf.xlu0
        %v1413 = vpop.trf.xlu0
        %v1414 = vpop.trf.xlu0
        %v1415 = vpack.c.bf16 %v1304, %v1303
        %v1416 = vpack.c.bf16 %v1306, %v1305
        %v1417 = vpack.c.bf16 %v1308, %v1307
        %v1418 = vpack.c.bf16 %v1310, %v1309
        %v1419 = vpack.c.bf16 %v1312, %v1311
        %v1420 = vpack.c.bf16 %v1314, %v1313
        %v1421 = vpack.c.bf16 %v1316, %v1315
        %v1422 = vpack.c.bf16 %v1318, %v1317
        %v1423 = vpack.c.bf16 %v1336, %v1335
        %v1424 = vpack.c.bf16 %v1338, %v1337
        %v1425 = vpack.c.bf16 %v1340, %v1339
        %v1426 = vpack.c.bf16 %v1342, %v1341
        %v1427 = vpack.c.bf16 %v1344, %v1343
        %v1428 = vpack.c.bf16 %v1346, %v1345
        %v1429 = vpack.c.bf16 %v1348, %v1347
        %v1430 = vpack.c.bf16 %v1350, %v1349
        %v1431 = vpack.c.bf16 %v1368, %v1367
        %v1432 = vpack.c.bf16 %v1370, %v1369
        %v1433 = vpack.c.bf16 %v1372, %v1371
        %v1434 = vpack.c.bf16 %v1374, %v1373
        %v1435 = vpack.c.bf16 %v1376, %v1375
        %v1436 = vpack.c.bf16 %v1378, %v1377
        %v1437 = vpack.c.bf16 %v1380, %v1379
        %v1438 = vpack.c.bf16 %v1382, %v1381
        %v1439 = vpack.c.bf16 %v1400, %v1399
        %v1440 = vpack.c.bf16 %v1402, %v1401
        %v1441 = vpack.c.bf16 %v1404, %v1403
        %v1442 = vpack.c.bf16 %v1406, %v1405
        %v1443 = vpack.c.bf16 %v1408, %v1407
        %v1444 = vpack.c.bf16 %v1410, %v1409
        %v1445 = vpack.c.bf16 %v1412, %v1411
        %v1446 = vpack.c.bf16 %v1414, %v1413
        %v1479 = vunpack.c.l.b16 %v1415
        %v1480 = vunpack.c.h.b16 %v1415
        %v1481 = vunpack.c.l.b16 %v1416
        %v1482 = vunpack.c.h.b16 %v1416
        %v1483 = vunpack.c.l.b16 %v1417
        %v1484 = vunpack.c.h.b16 %v1417
        %v1485 = vunpack.c.l.b16 %v1418
        %v1486 = vunpack.c.h.b16 %v1418
        %v1487 = vunpack.c.l.b16 %v1419
        %v1488 = vunpack.c.h.b16 %v1419
        %v1489 = vunpack.c.l.b16 %v1420
        %v1490 = vunpack.c.h.b16 %v1420
        %v1491 = vunpack.c.l.b16 %v1421
        %v1492 = vunpack.c.h.b16 %v1421
        %v1493 = vunpack.c.l.b16 %v1422
        %v1494 = vunpack.c.h.b16 %v1422
        %v1495 = vunpack.c.l.b16 %v1423
        %v1496 = vunpack.c.h.b16 %v1423
        %v1497 = vunpack.c.l.b16 %v1424
        %v1498 = vunpack.c.h.b16 %v1424
        %v1499 = vunpack.c.l.b16 %v1425
        %v1500 = vunpack.c.h.b16 %v1425
        %v1501 = vunpack.c.l.b16 %v1426
        %v1502 = vunpack.c.h.b16 %v1426
        %v1503 = vunpack.c.l.b16 %v1427
        %v1504 = vunpack.c.h.b16 %v1427
        %v1505 = vunpack.c.l.b16 %v1428
        %v1506 = vunpack.c.h.b16 %v1428
        %v1507 = vunpack.c.l.b16 %v1429
        %v1508 = vunpack.c.h.b16 %v1429
        %v1509 = vunpack.c.l.b16 %v1430
        %v1510 = vunpack.c.h.b16 %v1430
        %v1511 = vunpack.c.l.b16 %v1431
        %v1512 = vunpack.c.h.b16 %v1431
        %v1513 = vunpack.c.l.b16 %v1432
        %v1514 = vunpack.c.h.b16 %v1432
        %v1515 = vunpack.c.l.b16 %v1433
        %v1516 = vunpack.c.h.b16 %v1433
        %v1517 = vunpack.c.l.b16 %v1434
        %v1518 = vunpack.c.h.b16 %v1434
        %v1519 = vunpack.c.l.b16 %v1435
        %v1520 = vunpack.c.h.b16 %v1435
        %v1521 = vunpack.c.l.b16 %v1436
        %v1522 = vunpack.c.h.b16 %v1436
        %v1523 = vunpack.c.l.b16 %v1437
        %v1524 = vunpack.c.h.b16 %v1437
        %v1525 = vunpack.c.l.b16 %v1438
        %v1526 = vunpack.c.h.b16 %v1438
        %v1527 = vunpack.c.l.b16 %v1439
        %v1528 = vunpack.c.h.b16 %v1439
        %v1529 = vunpack.c.l.b16 %v1440
        %v1530 = vunpack.c.h.b16 %v1440
        %v1531 = vunpack.c.l.b16 %v1441
        %v1532 = vunpack.c.h.b16 %v1441
        %v1533 = vunpack.c.l.b16 %v1442
        %v1534 = vunpack.c.h.b16 %v1442
        %v1535 = vunpack.c.l.b16 %v1443
        %v1536 = vunpack.c.h.b16 %v1443
        %v1537 = vunpack.c.l.b16 %v1444
        %v1538 = vunpack.c.h.b16 %v1444
        %v1539 = vunpack.c.l.b16 %v1445
        %v1540 = vunpack.c.h.b16 %v1445
        %v1541 = vunpack.c.l.b16 %v1446
        %v1542 = vunpack.c.h.b16 %v1446
        %v1543 = vpack.c.b16 %v1479, %v1479
        %v1544 = vpack.c.b16 %v1480, %v1480
        %v1545 = vpack.c.b16 %v1481, %v1481
        %v1546 = vpack.c.b16 %v1482, %v1482
        %v1547 = vpack.c.b16 %v1483, %v1483
        %v1548 = vpack.c.b16 %v1484, %v1484
        %v1549 = vpack.c.b16 %v1485, %v1485
        %v1550 = vpack.c.b16 %v1486, %v1486
        %v1551 = vpack.c.b16 %v1487, %v1487
        %v1552 = vpack.c.b16 %v1488, %v1488
        %v1553 = vpack.c.b16 %v1489, %v1489
        %v1554 = vpack.c.b16 %v1490, %v1490
        %v1555 = vpack.c.b16 %v1491, %v1491
        %v1556 = vpack.c.b16 %v1492, %v1492
        %v1557 = vpack.c.b16 %v1493, %v1493
        %v1558 = vpack.c.b16 %v1494, %v1494
        %v1559 = vpack.c.b16 %v1495, %v1495
        %v1560 = vpack.c.b16 %v1496, %v1496
        %v1561 = vpack.c.b16 %v1497, %v1497
        %v1562 = vpack.c.b16 %v1498, %v1498
        %v1563 = vpack.c.b16 %v1499, %v1499
        %v1564 = vpack.c.b16 %v1500, %v1500
        %v1565 = vpack.c.b16 %v1501, %v1501
        %v1566 = vpack.c.b16 %v1502, %v1502
        %v1567 = vpack.c.b16 %v1503, %v1503
        %v1568 = vpack.c.b16 %v1504, %v1504
        %v1569 = vpack.c.b16 %v1505, %v1505
        %v1570 = vpack.c.b16 %v1506, %v1506
        %v1571 = vpack.c.b16 %v1507, %v1507
        %v1572 = vpack.c.b16 %v1508, %v1508
        %v1573 = vpack.c.b16 %v1509, %v1509
        %v1574 = vpack.c.b16 %v1510, %v1510
        %v1575 = vpack.c.b16 %v1511, %v1511
        %v1576 = vpack.c.b16 %v1512, %v1512
        %v1577 = vpack.c.b16 %v1513, %v1513
        %v1578 = vpack.c.b16 %v1514, %v1514
        %v1579 = vpack.c.b16 %v1515, %v1515
        %v1580 = vpack.c.b16 %v1516, %v1516
        %v1581 = vpack.c.b16 %v1517, %v1517
        %v1582 = vpack.c.b16 %v1518, %v1518
        %v1583 = vpack.c.b16 %v1519, %v1519
        %v1584 = vpack.c.b16 %v1520, %v1520
        %v1585 = vpack.c.b16 %v1521, %v1521
        %v1586 = vpack.c.b16 %v1522, %v1522
        %v1587 = vpack.c.b16 %v1523, %v1523
        %v1588 = vpack.c.b16 %v1524, %v1524
        %v1589 = vpack.c.b16 %v1525, %v1525
        %v1590 = vpack.c.b16 %v1526, %v1526
        %v1591 = vpack.c.b16 %v1527, %v1527
        %v1592 = vpack.c.b16 %v1528, %v1528
        %v1593 = vpack.c.b16 %v1529, %v1529
        %v1594 = vpack.c.b16 %v1530, %v1530
        %v1595 = vpack.c.b16 %v1531, %v1531
        %v1596 = vpack.c.b16 %v1532, %v1532
        %v1597 = vpack.c.b16 %v1533, %v1533
        %v1598 = vpack.c.b16 %v1534, %v1534
        %v1599 = vpack.c.b16 %v1535, %v1535
        %v1600 = vpack.c.b16 %v1536, %v1536
        %v1601 = vpack.c.b16 %v1537, %v1537
        %v1602 = vpack.c.b16 %v1538, %v1538
        %v1603 = vpack.c.b16 %v1539, %v1539
        %v1604 = vpack.c.b16 %v1540, %v1540
        %v1605 = vpack.c.b16 %v1541, %v1541
        %v1606 = vpack.c.b16 %v1542, %v1542
        %vm1671 = vcmask 257024
        %1672 = vst.msk [vmem:[%s416] sm:$0xf] %vm1671, %v1543
        %1673 = vst.msk [vmem:[%s416 + $0x4] sm:$0xf] %vm1671, %v1544
        %1674 = vst.msk [vmem:[%s416 + $0x8] sm:$0xf] %vm1671, %v1545
        %1675 = vst.msk [vmem:[%s416 + $0xc] sm:$0xf] %vm1671, %v1546
        %1676 = vst.msk [vmem:[%s416 + $0x10] sm:$0xf] %vm1671, %v1547
        %1677 = vst.msk [vmem:[%s416 + $0x14] sm:$0xf] %vm1671, %v1548
        %1678 = vst.msk [vmem:[%s416 + $0x18] sm:$0xf] %vm1671, %v1549
        %1679 = vst.msk [vmem:[%s416 + $0x1c] sm:$0xf] %vm1671, %v1550
        %1680 = vst.msk [vmem:[%s416 + $0x20] sm:$0xf] %vm1671, %v1551
        %1681 = vst.msk [vmem:[%s416 + $0x24] sm:$0xf] %vm1671, %v1552
        %1682 = vst.msk [vmem:[%s416 + $0x28] sm:$0xf] %vm1671, %v1553
        %1683 = vst.msk [vmem:[%s416 + $0x2c] sm:$0xf] %vm1671, %v1554
        %1684 = vst.msk [vmem:[%s416 + $0x30] sm:$0xf] %vm1671, %v1555
        %1685 = vst.msk [vmem:[%s416 + $0x34] sm:$0xf] %vm1671, %v1556
        %1686 = vst.msk [vmem:[%s416 + $0x38] sm:$0xf] %vm1671, %v1557
        %1687 = vst.msk [vmem:[%s416 + $0x3c] sm:$0xf] %vm1671, %v1558
        %1688 = vst.msk [vmem:[%s416 + $0x40] sm:$0xf] %vm1671, %v1559
        %1689 = vst.msk [vmem:[%s416 + $0x44] sm:$0xf] %vm1671, %v1560
        %1690 = vst.msk [vmem:[%s416 + $0x48] sm:$0xf] %vm1671, %v1561
        %1691 = vst.msk [vmem:[%s416 + $0x4c] sm:$0xf] %vm1671, %v1562
        %1692 = vst.msk [vmem:[%s416 + $0x50] sm:$0xf] %vm1671, %v1563
        %1693 = vst.msk [vmem:[%s416 + $0x54] sm:$0xf] %vm1671, %v1564
        %1694 = vst.msk [vmem:[%s416 + $0x58] sm:$0xf] %vm1671, %v1565
        %1695 = vst.msk [vmem:[%s416 + $0x5c] sm:$0xf] %vm1671, %v1566
        %1696 = vst.msk [vmem:[%s416 + $0x60] sm:$0xf] %vm1671, %v1567
        %1697 = vst.msk [vmem:[%s416 + $0x64] sm:$0xf] %vm1671, %v1568
        %1698 = vst.msk [vmem:[%s416 + $0x68] sm:$0xf] %vm1671, %v1569
        %1699 = vst.msk [vmem:[%s416 + $0x6c] sm:$0xf] %vm1671, %v1570
        %1700 = vst.msk [vmem:[%s416 + $0x70] sm:$0xf] %vm1671, %v1571
        %1701 = vst.msk [vmem:[%s416 + $0x74] sm:$0xf] %vm1671, %v1572
        %1702 = vst.msk [vmem:[%s416 + $0x78] sm:$0xf] %vm1671, %v1573
        %1703 = vst.msk [vmem:[%s416 + $0x7c] sm:$0xf] %vm1671, %v1574
        %1704 = vst.msk [vmem:[%s416 + $0x80] sm:$0xf] %vm1671, %v1575
        %1705 = vst.msk [vmem:[%s416 + $0x84] sm:$0xf] %vm1671, %v1576
        %1706 = vst.msk [vmem:[%s416 + $0x88] sm:$0xf] %vm1671, %v1577
        %1707 = vst.msk [vmem:[%s416 + $0x8c] sm:$0xf] %vm1671, %v1578
        %1708 = vst.msk [vmem:[%s416 + $0x90] sm:$0xf] %vm1671, %v1579
        %1709 = vst.msk [vmem:[%s416 + $0x94] sm:$0xf] %vm1671, %v1580
        %1710 = vst.msk [vmem:[%s416 + $0x98] sm:$0xf] %vm1671, %v1581
        %1711 = vst.msk [vmem:[%s416 + $0x9c] sm:$0xf] %vm1671, %v1582
        %1712 = vst.msk [vmem:[%s416 + $0xa0] sm:$0xf] %vm1671, %v1583
        %1713 = vst.msk [vmem:[%s416 + $0xa4] sm:$0xf] %vm1671, %v1584
        %1714 = vst.msk [vmem:[%s416 + $0xa8] sm:$0xf] %vm1671, %v1585
        %1715 = vst.msk [vmem:[%s416 + $0xac] sm:$0xf] %vm1671, %v1586
        %1716 = vst.msk [vmem:[%s416 + $0xb0] sm:$0xf] %vm1671, %v1587
        %1717 = vst.msk [vmem:[%s416 + $0xb4] sm:$0xf] %vm1671, %v1588
        %1718 = vst.msk [vmem:[%s416 + $0xb8] sm:$0xf] %vm1671, %v1589
        %1719 = vst.msk [vmem:[%s416 + $0xbc] sm:$0xf] %vm1671, %v1590
        %1720 = vst.msk [vmem:[%s416 + $0xc0] sm:$0xf] %vm1671, %v1591
        %1721 = vst.msk [vmem:[%s416 + $0xc4] sm:$0xf] %vm1671, %v1592
        %1722 = vst.msk [vmem:[%s416 + $0xc8] sm:$0xf] %vm1671, %v1593
        %1723 = vst.msk [vmem:[%s416 + $0xcc] sm:$0xf] %vm1671, %v1594
        %1724 = vst.msk [vmem:[%s416 + $0xd0] sm:$0xf] %vm1671, %v1595
        %1725 = vst.msk [vmem:[%s416 + $0xd4] sm:$0xf] %vm1671, %v1596
        %1726 = vst.msk [vmem:[%s416 + $0xd8] sm:$0xf] %vm1671, %v1597
        %1727 = vst.msk [vmem:[%s416 + $0xdc] sm:$0xf] %vm1671, %v1598
        %1728 = vst.msk [vmem:[%s416 + $0xe0] sm:$0xf] %vm1671, %v1599
        %1729 = vst.msk [vmem:[%s416 + $0xe4] sm:$0xf] %vm1671, %v1600
        %1730 = vst.msk [vmem:[%s416 + $0xe8] sm:$0xf] %vm1671, %v1601
        %1731 = vst.msk [vmem:[%s416 + $0xec] sm:$0xf] %vm1671, %v1602
        %1732 = vst.msk [vmem:[%s416 + $0xf0] sm:$0xf] %vm1671, %v1603
        %1733 = vst.msk [vmem:[%s416 + $0xf4] sm:$0xf] %vm1671, %v1604
        %1734 = vst.msk [vmem:[%s416 + $0xf8] sm:$0xf] %vm1671, %v1605
        %1735 = vst.msk [vmem:[%s416 + $0xfc] sm:$0xf] %vm1671, %v1606
        %s1736 = smul.u32 64, %s32
        %p1737 = scmp.lt.s32.totalorder %s31, 1
        %s1738 = scalar_select %p1737, %s31, 1
        %p1739 = scmp.lt.s32.totalorder %s1736, 127
        %s1740 = scalar_select %p1739, %s1736, 127
        %s1741 = smul.addr %s1738, 128
        %s1742 = sadd.s32 %s1740, %s1741
        %s1743 = smul.addr %s1742, 4
        %s1744 = scalar_lea.vmem %s7, %s1743
        %s1745 = sand.u32 %s231, 1
        %s1746 = scalar_lea.sflag [#allocation4], %s1745
        %s1747 = sand.u32 %s231, 1
        %s1748 = smul.addr %s1747, 32
        %s1749 = scalar_lea.vmem [#allocation5], %s1748
        %s1750 = smul.u32 64, %s32
        %p1751 = scmp.lt.s32.totalorder %s31, 1
        %s1752 = scalar_select %p1751, %s31, 1
        %p1753 = scmp.lt.s32.totalorder %s1750, 127
        %s1754 = scalar_select %p1753, %s1750, 127
        %s1755 = smul.addr %s1752, 128
        %s1756 = sadd.s32 %s1754, %s1755
        %s1757 = smul.addr %s1756, 4
        %s1758 = scalar_lea.vmem %s9, %s1757
        // Predicated region
        $region53: #{tpu_custom_call.1} parent=47 // pred_check
          %p1759 = pneg %p213
        $region54: #{tpu_custom_call.1} parent=47 // pred_check_branch
          %1761 = sbr.rel (%p1759) target = $region56
        $region55: #{tpu_custom_call.1} parent=47 // pred_region
          %s1762 = smul.u32 64, %s32
        $region56: #{tpu_custom_call.1} parent=47 // pred_fallthru
          _
        // Predicated region
        $region57: #{tpu_custom_call.1} parent=47 // pred_check
          %p1763 = pneg %p241
        $region58: #{tpu_custom_call.1} parent=47 // pred_check_branch
          %1765 = sbr.rel (%p1763) target = $region60
        $region59: #{tpu_custom_call.1} parent=47 // pred_region
          %s1766 = smul.u32 4, %s32
          %s1768 = ssub.s32 512, 512
          %1769 = vsyncadd %s1746, %s1768
          %s1770 = smul.addr %s31, 16
          %s1771 = sadd.s32 %s1766, %s1770
          %s1772 = smul.addr %s1771, 64
          %s1773 = scalar_lea.hbm %s8, %s1772
          %s1774 = sshll.u32 %s1749, 4
          %s1775 = int_to_ptr.vmem [resolvable:$true] %s1774
          %1780 = dma.vmem_to_hbm [thread:$0]  %s1775, 512, %s1773, %s1746, 256, 512, 16
        $region60: #{tpu_custom_call.1} parent=47 // pred_fallthru
          _
        // Predicated region
        $region61: #{tpu_custom_call.1} parent=47 // pred_check
          %p1781 = pneg %p269
        $region62: #{tpu_custom_call.1} parent=47 // pred_check_branch
          %1783 = sbr.rel (%p1781) target = $region64
        $region63: #{tpu_custom_call.1} parent=47 // pred_region
          %s1784 = smul.u32 64, %s32
        $region64: #{tpu_custom_call.1} parent=47 // pred_fallthru
          _
      $region48: #{tpu_custom_call.1} parent=5 // pred_fallthru
        _
      %p1785 = scmp.le.s32.totalorder 2, %s22
      // Predicated region
      $region65: #{tpu_custom_call.1} parent=5 // pred_check
        %p1786 = pneg %p1785
      $region66: #{tpu_custom_call.1} parent=5 // pred_check_branch
        %1788 = sbr.rel (%p1786) target = $region68
      $region67: #{tpu_custom_call.1} parent=5 // pred_region
        %s1789 = ssub.s32 %s22, 2
        // Predicated region
        $region69: #{tpu_custom_call.1} parent=67 // pred_check
          %p1790 = pneg %p219
        $region70: #{tpu_custom_call.1} parent=67 // pred_check_branch
          %1792 = sbr.rel (%p1790) target = $region72
        $region71: #{tpu_custom_call.1} parent=67 // pred_region
          %s1793 = smul.u32 64, %s34
          %p1794 = scmp.lt.s32.totalorder %s33, 1
          %s1795 = scalar_select %p1794, %s33, 1
          %p1796 = scmp.lt.s32.totalorder %s1793, 127
          %s1797 = scalar_select %p1796, %s1793, 127
          %s1798 = smul.addr %s1795, 128
          %s1799 = sadd.s32 %s1797, %s1798
          %s1800 = smul.addr %s1799, 4
          %s1801 = scalar_lea.vmem %s7, %s1800
        $region72: #{tpu_custom_call.1} parent=67 // pred_fallthru
          _
        // Predicated region
        $region73: #{tpu_custom_call.1} parent=67 // pred_check
          %p1802 = pneg %p247
        $region74: #{tpu_custom_call.1} parent=67 // pred_check_branch
          %1804 = sbr.rel (%p1802) target = $region76
        $region75: #{tpu_custom_call.1} parent=67 // pred_region
          %s1805 = sand.u32 %s232, 1
          %s1806 = scalar_lea.sflag [#allocation4], %s1805
          %s1807 = sand.u32 %s232, 1
          %s1808 = smul.addr %s1807, 32
          %s1809 = scalar_lea.vmem [#allocation5], %s1808
          %1810 = dma.done %s1806, 512
        $region76: #{tpu_custom_call.1} parent=67 // pred_fallthru
          _
        // Predicated region
        $region77: #{tpu_custom_call.1} parent=67 // pred_check
          %p1811 = pneg %p275
        $region78: #{tpu_custom_call.1} parent=67 // pred_check_branch
          %1813 = sbr.rel (%p1811) target = $region80
        $region79: #{tpu_custom_call.1} parent=67 // pred_region
          %s1814 = smul.u32 64, %s34
          %p1815 = scmp.lt.s32.totalorder %s33, 1
          %s1816 = scalar_select %p1815, %s33, 1
          %p1817 = scmp.lt.s32.totalorder %s1814, 127
          %s1818 = scalar_select %p1817, %s1814, 127
          %s1819 = smul.addr %s1816, 128
          %s1820 = sadd.s32 %s1818, %s1819
          %s1821 = smul.addr %s1820, 4
          %s1822 = scalar_lea.vmem %s9, %s1821
        $region80: #{tpu_custom_call.1} parent=67 // pred_fallthru
          _
      $region68: #{tpu_custom_call.1} parent=5 // pred_fallthru
        _
    $region6: #{tpu_custom_call.1} parent=1 // loop_footer
      %s26 = sadd.s32 1, %s22
    $region7: #{tpu_custom_call.1} parent=1 // loop_footer_branch
      %21 = sbr.rel target = $region3
    $region8: #{tpu_custom_call.1} parent=1 // loop_exit
      _
    %1823 = vsyncpa [#allocation3], 1
    %s1824 = scalar_lea.sflag [#allocation3], 1
    %1825 = vsyncpa %s1824, 1
    %1826 = vsyncpa [#allocation4], 1
    %s1827 = scalar_lea.sflag [#allocation4], 1
    %1828 = vsyncpa %s1827, 1

</llo_original>
